<compile_context>
chip_gen: v6e
topology: v6e:2x2x1
jax: 0.10.0
libtpu: 0.0.40
codegen_flags: <defaults>
</compile_context>

<pallas_src>
import jax
import jax.numpy as jnp
from jax import lax
from jax.experimental import pallas as pl
from jax.experimental.pallas import tpu as pltpu

_SQRT_HALF = 0.7071067811865476


def _gelu(h, approximate):
    if approximate:
        # tanh-approx GELU: transcendental goes to the EUP slot (free filler under MXU).
        return jax.nn.gelu(h, approximate=True)
    # Exact (erf-based) GELU, matching torch.nn.GELU() default.
    return 0.5 * h * (1.0 + lax.erf(h * jnp.float32(_SQRT_HALF)))


# ---------------------------------------------------------------------------
# Kernels
# ---------------------------------------------------------------------------
def _make_resident_kernel(approximate_gelu, mxu_dtype):
    """Weights fully resident in VMEM: one (tm, dim) token tile per grid step."""

    def kernel(x_ref, w1_ref, b1_ref, w2_ref, b2_ref, o_ref):
        x = x_ref[...].astype(mxu_dtype)
        h = jnp.dot(x, w1_ref[...], preferred_element_type=jnp.float32)
        h = h + b1_ref[...].astype(jnp.float32)
        h = _gelu(h, approximate_gelu)
        out = jnp.dot(h.astype(w2_ref.dtype), w2_ref[...],
                      preferred_element_type=jnp.float32)
        out = out + b2_ref[...].astype(jnp.float32)
        o_ref[...] = out.astype(o_ref.dtype)

    return kernel


def _make_stream_kernel(approximate_gelu, mxu_dtype):
    """One (tm, dim) token tile x one tk-wide hidden chunk (reduction axis)."""

    def kernel(x_ref, w1_ref, b1_ref, w2_ref, b2_ref, o_ref, acc_ref):
        k = pl.program_id(1)

        @pl.when(k == 0)
        def _init():
            # Fold the second bias into the accumulator init (saves the epilogue add).
            acc_ref[...] = jnp.broadcast_to(
                b2_ref[...].astype(jnp.float32), acc_ref.shape)

        x = x_ref[...].astype(mxu_dtype)
        h = jnp.dot(x, w1_ref[...], preferred_element_type=jnp.float32)
        h = h + b1_ref[...].astype(jnp.float32)
        h = _gelu(h, approximate_gelu)
        acc_ref[...] += jnp.dot(h.astype(w2_ref.dtype), w2_ref[...],
                                preferred_element_type=jnp.float32)

        @pl.when(k == pl.num_programs(1) - 1)
        def _finalize():
            o_ref[...] = acc_ref[...].astype(o_ref.dtype)

    return kernel


# ---------------------------------------------------------------------------
# Tiling / budget helpers
# ---------------------------------------------------------------------------
def _round_up(x, m):
    return ((x + m - 1) // m) * m


def _vmem_budget_bytes():
    """~80% of this generation's physical VMEM (v5e/v6e ~102 MiB, v7x ~51 MiB)."""
    cap = 64 * 1024 * 1024  # conservative fallback (v7x per-core size)
    try:
        cap = int(pltpu.get_tpu_info().vmem_capacity_bytes)
    except Exception:
        pass
    return int(cap * 0.8)


def _choose_m_tiling(M, tm_target):
    """>=2 M tiles whenever possible (so the 'parallel' axis shards across the two
    TensorCores on v7x); tile rounded to the sublane multiple so the M padding is
    at most 8*n_tiles rows."""
    if M >= 16:
        n_m = max(2, pl.cdiv(M, tm_target))
    else:
        n_m = 1
    tm = _round_up(pl.cdiv(M, n_m), 8)
    return tm, n_m * tm


def _choose_tk(hidden, tk_target):
    """Prefer a lane-aligned tk that divides hidden exactly (no padded weight copies)."""
    best = None
    for cand in range(128, min(tk_target, hidden) + 1, 128):
        if hidden % cand == 0:
            best = cand
    if best is not None:
        return best, hidden
    tk = _round_up(min(max(tk_target, 128), hidden), 128)
    return tk, _round_up(hidden, tk)


# ---------------------------------------------------------------------------
# Wrapper
# ---------------------------------------------------------------------------
def feed_forward(x, w1, b1, w2, b2, *, tm=512, tk=512,
                 approximate_gelu=False, mxu_bf16=False,
                 force_weight_streaming=False):
    """x: (B, N, dim). w1: (dim, hidden), b1: (hidden,), w2: (hidden, dim), b2: (dim,)."""
    B, N, dim = x.shape
    hidden = w1.shape[1]
    M = B * N
    out_dtype = x.dtype

    if mxu_bf16:
        # f32xf32 runs the MXU in a slow multi-pass mode; cast operands to bf16
        # (accumulation stays f32 via preferred_element_type).
        w1 = w1.astype(jnp.bfloat16)
        w2 = w2.astype(jnp.bfloat16)
        mxu_dtype = jnp.bfloat16
    else:
        mxu_dtype = x.dtype

    isz = x.dtype.itemsize
    wsz = w1.dtype.itemsize
    budget = _vmem_budget_bytes()

    def resident_est(tmi):
        return (4 * dim * hidden * wsz          # w1 + w2 (worst case: double-buffered)
                + 4 * (hidden + dim) * wsz      # biases
                + 4 * tmi * dim * isz           # x / out tiles (double-buffered)
                + tmi * hidden * 4              # f32 GELU intermediate
                + 2 * tmi * dim * 4)            # f32 matmul-2 result before cast

    def stream_est(tmi, tki):
        return (2 * tmi * dim * isz             # x tiles
                + 4 * dim * tki * wsz           # w1 / w2 chunks (double-buffered)
                + 4 * (tki + dim) * wsz         # biases
                + 2 * tmi * dim * isz           # out tiles
                + tmi * dim * 4                 # f32 accumulator scratch
                + tmi * tki * 4)                # f32 GELU intermediate

    # --- pick the M tiling and the structural path ------------------------------
    tm_i, m_pad = _choose_m_tiling(M, tm)
    use_resident = (not force_weight_streaming) and resident_est(tm_i) <= budget
    if not use_resident and not force_weight_streaming:
        for cand in (256, 128):
            if cand < tm:
                tmi2, mp2 = _choose_m_tiling(M, cand)
                if resident_est(tmi2) <= budget:
                    tm_i, m_pad, use_resident = tmi2, mp2, True
                    break

    if not use_resident:
        tk_i, h_pad = _choose_tk(hidden, tk)
        tm_t = tm
        while stream_est(tm_i, tk_i) > budget and tm_t > 64:
            tm_t //= 2
            tm_i, m_pad = _choose_m_tiling(M, tm_t)

    # --- prepare operands (padding kept minimal) ---------------------------------
    x2d = x.reshape(M, dim)
    if m_pad != M:
        # <= 8 * n_tiles padded rows; row-independent, sliced off below.
        x2d = jnp.pad(x2d, ((0, m_pad - M), (0, 0)))
    b2_2d = b2.reshape(1, dim)
    grid_m = m_pad // tm_i

    if use_resident:
        b1_2d = b1.reshape(1, hidden)
        cost = pl.CostEstimate(
            flops=4 * M * dim * hidden,
            transcendentals=M * hidden,
            bytes_accessed=(2 * M * dim * isz
                            + (2 * dim * hidden + hidden + dim) * wsz),
        )
        out2d = pl.pallas_call(
            _make_resident_kernel(approximate_gelu, mxu_dtype),
            out_shape=jax.ShapeDtypeStruct((m_pad, dim), out_dtype),
            grid_spec=pltpu.PrefetchScalarGridSpec(
                num_scalar_prefetch=0,
                grid=(grid_m,),
                in_specs=[
                    pl.BlockSpec((tm_i, dim), lambda i: (i, 0)),     # x tile
                    pl.BlockSpec((dim, hidden), lambda i: (0, 0)),   # w1 resident
                    pl.BlockSpec((1, hidden), lambda i: (0, 0)),     # b1 resident
                    pl.BlockSpec((hidden, dim), lambda i: (0, 0)),   # w2 resident
                    pl.BlockSpec((1, dim), lambda i: (0, 0)),        # b2 resident
                ],
                out_specs=pl.BlockSpec((tm_i, dim), lambda i: (i, 0)),
            ),
            compiler_params=pltpu.CompilerParams(
                dimension_semantics=("parallel",),
                vmem_limit_bytes=budget,
            ),
            cost_estimate=cost,
        )(x2d, w1, b1_2d, w2, b2_2d)
    else:
        if h_pad != hidden:
            # TODO(synk): pre-pad weights once outside the per-call path if hidden has
            # no lane-aligned divisor (real ViT hidden sizes never hit this branch).
            w1 = jnp.pad(w1, ((0, 0), (0, h_pad - hidden)))
            b1 = jnp.pad(b1, (0, h_pad - hidden))
            w2 = jnp.pad(w2, ((0, h_pad - hidden), (0, 0)))
        b1_2d = b1.reshape(1, h_pad)
        grid_k = h_pad // tk_i
        cost = pl.CostEstimate(
            flops=4 * M * dim * hidden,
            transcendentals=M * hidden,
            bytes_accessed=(2 * M * dim * isz
                            + grid_m * 2 * dim * h_pad * wsz    # weights re-streamed per M tile
                            + (h_pad + dim) * wsz),
        )
        out2d = pl.pallas_call(
            _make_stream_kernel(approximate_gelu, mxu_dtype),
            out_shape=jax.ShapeDtypeStruct((m_pad, dim), out_dtype),
            grid_spec=pltpu.PrefetchScalarGridSpec(
                num_scalar_prefetch=0,
                grid=(grid_m, grid_k),
                in_specs=[
                    pl.BlockSpec((tm_i, dim), lambda i, k: (i, 0)),  # x tile (reused over k)
                    pl.BlockSpec((dim, tk_i), lambda i, k: (0, k)),  # w1 column chunk
                    pl.BlockSpec((1, tk_i), lambda i, k: (0, k)),    # b1 chunk
                    pl.BlockSpec((tk_i, dim), lambda i, k: (k, 0)),  # w2 row chunk
                    pl.BlockSpec((1, dim), lambda i, k: (0, 0)),     # b2 (tiny, resident)
                ],
                out_specs=pl.BlockSpec((tm_i, dim), lambda i, k: (i, 0)),
                scratch_shapes=[pltpu.VMEM((tm_i, dim), jnp.float32)],
            ),
            compiler_params=pltpu.CompilerParams(
                dimension_semantics=("parallel", "arbitrary"),
                vmem_limit_bytes=budget,
            ),
            cost_estimate=cost,
        )(x2d, w1, b1_2d, w2, b2_2d)

    return out2d[:M].reshape(B, N, dim)


def reference(x, w1, b1, w2, b2, approximate_gelu=False):
    h = jnp.dot(x, w1) + b1
    h = _gelu(h, approximate_gelu)
    return jnp.dot(h, w2) + b2


if __name__ == "__main__":
    key = jax.random.PRNGKey(0)
    # Small ViT-ish shapes; M = 2*197 = 394 exercises the ragged-M tiling, and the
    # forced-streaming test exercises the multi-step hidden reduction.
    B, N, dim, hidden = 2, 197, 128, 384

    k_x, k_w1, k_b1, k_w2, k_b2 = jax.random.split(key, 5)
    x = jax.random.normal(k_x, (B, N, dim), dtype=jnp.float32)
    # nn.Linear weights stored transposed: W1 (dim, hidden), W2 (hidden, dim).
    w1 = jax.random.normal(k_w1, (dim, hidden), dtype=jnp.float32) * 0.05
    b1 = jax.random.normal(k_b1, (hidden,), dtype=jnp.float32) * 0.05
    w2 = jax.random.normal(k_w2, (hidden, dim), dtype=jnp.float32) * 0.05
    b2 = jax.random.normal(k_b2, (dim,), dtype=jnp.float32) * 0.05

    ref = reference(x, w1, b1, w2, b2)
    ref_tanh = reference(x, w1, b1, w2, b2, approximate_gelu=True)

    # 1) f32, weight-resident fast path (exact erf GELU, f32 MXU) -> exact parity.
    out = jax.block_until_ready(feed_forward(x, w1, b1, w2, b2))
    assert out.shape == (B, N, dim)
    assert jnp.allclose(out, ref, atol=1e-4, rtol=1e-4), "f32 resident mismatch"

    # 2) f32, forced weight-streaming path (multi-step hidden reduction, b2 folded into acc).
    out_s = jax.block_until_ready(
        feed_forward(x, w1, b1, w2, b2, tk=128, force_weight_streaming=True))
    assert jnp.allclose(out_s, ref, atol=1e-4, rtol=1e-4), "f32 streaming mismatch"

    # 3) f32 inputs with bf16 MXU operands + tanh GELU (the fast production config).
    out_f = jax.block_until_ready(
        feed_forward(x, w1, b1, w2, b2, mxu_bf16=True, approximate_gelu=True))
    err_f = jnp.max(jnp.abs(out_f - ref_tanh))
    assert err_f < 5e-2, f"bf16-MXU mismatch vs tanh reference: {err_f}"

    # 4) bf16 end-to-end.
    xb, w1b, b1b, w2b, b2b = (a.astype(jnp.bfloat16) for a in (x, w1, b1, w2, b2))
    out_b = jax.block_until_ready(feed_forward(xb, w1b, b1b, w2b, b2b))
    assert out_b.dtype == jnp.bfloat16
    err_b = jnp.max(jnp.abs(out_b.astype(jnp.float32) - ref))
    assert err_b < 1e-1, f"bf16 mismatch vs reference: {err_b}"

    print("KERNEL_OK")
</pallas_src>

<mosaic_0001>
module attributes {stable_mosaic.version = 11 : i64} {
  func.func @kernel(%arg0: i32, %arg1: memref<200x128xf32, #tpu.memory_space<vmem>>, %arg2: memref<128x384xf32, #tpu.memory_space<vmem>>, %arg3: memref<1x384xf32, #tpu.memory_space<vmem>>, %arg4: memref<384x128xf32, #tpu.memory_space<vmem>>, %arg5: memref<1x128xf32, #tpu.memory_space<vmem>>, %arg6: memref<200x128xf32, #tpu.memory_space<vmem>>) attributes {dimension_semantics = [#tpu.dimension_semantics<parallel>], iteration_bounds = array<i64: 2>, scalar_prefetch = 0 : i64, scratch_operands = 0 : i64, tpu.core_type = #tpu.core_type<tc>, window_params = [{transform_indices = @transform_0, window_bounds = array<i64: 200, 128>}, {pipeline_mode = #tpu.pipeline_mode<synchronous>, transform_indices = @transform_1, window_bounds = array<i64: 128, 384>}, {pipeline_mode = #tpu.pipeline_mode<synchronous>, transform_indices = @transform_2, window_bounds = array<i64: 1, 384>}, {pipeline_mode = #tpu.pipeline_mode<synchronous>, transform_indices = @transform_3, window_bounds = array<i64: 384, 128>}, {pipeline_mode = #tpu.pipeline_mode<synchronous>, transform_indices = @transform_4, window_bounds = array<i64: 1, 128>}, {transform_indices = @transform_5, window_bounds = array<i64: 200, 128>}]} {
    %c0 = arith.constant 0 : index
    %c0_0 = arith.constant 0 : index
    %0 = vector.load %arg1[%c0, %c0_0] : memref<200x128xf32, #tpu.memory_space<vmem>>, vector<200x128xf32>
    %c0_1 = arith.constant 0 : index
    %c0_2 = arith.constant 0 : index
    %1 = vector.load %arg2[%c0_1, %c0_2] : memref<128x384xf32, #tpu.memory_space<vmem>>, vector<128x384xf32>
    %cst = arith.constant dense<0.000000e+00> : vector<200x384xf32>
    %2 = tpu.matmul %0, %1, %cst {dimension_numbers = #tpu.dot_dimension_numbers<[1], [0], [0], [1], [0, 0, 1, 1], [], []>} : vector<200x128xf32>, vector<128x384xf32>, vector<200x384xf32> -> vector<200x384xf32>
    %c0_3 = arith.constant 0 : index
    %c0_4 = arith.constant 0 : index
    %3 = vector.load %arg3[%c0_3, %c0_4] : memref<1x384xf32, #tpu.memory_space<vmem>>, vector<1x384xf32>
    %4 = vector.broadcast %3 : vector<1x384xf32> to vector<200x384xf32>
    %5 = arith.addf %2, %4 : vector<200x384xf32>
    %cst_5 = arith.constant 5.000000e-01 : f32
    %6 = vector.broadcast %cst_5 : f32 to vector<200x384xf32>
    %7 = arith.mulf %6, %5 : vector<200x384xf32>
    %cst_6 = arith.constant 0.707106769 : f32
    %8 = vector.broadcast %cst_6 : f32 to vector<200x384xf32>
    %9 = arith.mulf %5, %8 : vector<200x384xf32>
    %10 = math.erf %9 : vector<200x384xf32>
    %cst_7 = arith.constant 1.000000e+00 : f32
    %11 = vector.broadcast %cst_7 : f32 to vector<200x384xf32>
    %12 = arith.addf %11, %10 : vector<200x384xf32>
    %13 = arith.mulf %7, %12 : vector<200x384xf32>
    %c0_8 = arith.constant 0 : index
    %c0_9 = arith.constant 0 : index
    %14 = vector.load %arg4[%c0_8, %c0_9] : memref<384x128xf32, #tpu.memory_space<vmem>>, vector<384x128xf32>
    %cst_10 = arith.constant dense<0.000000e+00> : vector<200x128xf32>
    %15 = tpu.matmul %13, %14, %cst_10 {dimension_numbers = #tpu.dot_dimension_numbers<[1], [0], [0], [1], [0, 0, 1, 1], [], []>} : vector<200x384xf32>, vector<384x128xf32>, vector<200x128xf32> -> vector<200x128xf32>
    %c0_11 = arith.constant 0 : index
    %c0_12 = arith.constant 0 : index
    %16 = vector.load %arg5[%c0_11, %c0_12] : memref<1x128xf32, #tpu.memory_space<vmem>>, vector<1x128xf32>
    %17 = vector.broadcast %16 : vector<1x128xf32> to vector<200x128xf32>
    %18 = arith.addf %15, %17 : vector<200x128xf32>
    %c0_13 = arith.constant 0 : index
    %c0_14 = arith.constant 0 : index
    %19 = vector.load %arg6[%c0_13, %c0_14] : memref<200x128xf32, #tpu.memory_space<vmem>>, vector<200x128xf32>
    tpu.vector_store %arg6[%c0_13, %c0_14], %18 {strides = array<i32>} : memref<200x128xf32, #tpu.memory_space<vmem>>, vector<200x128xf32>,
    return
  }
  func.func @transform_0(%arg0: i32) -> (i32, i32) {
    %c0_i32 = arith.constant 0 : i32
    %c0_i32_0 = arith.constant 0 : i32
    return %arg0, %c0_i32 : i32, i32
  }
  func.func @transform_1(%arg0: i32) -> (i32, i32) {
    %c0_i32 = arith.constant 0 : i32
    %c0_i32_0 = arith.constant 0 : i32
    %c0_i32_1 = arith.constant 0 : i32
    return %c0_i32, %c0_i32_0 : i32, i32
  }
  func.func @transform_2(%arg0: i32) -> (i32, i32) {
    %c0_i32 = arith.constant 0 : i32
    %c0_i32_0 = arith.constant 0 : i32
    %c0_i32_1 = arith.constant 0 : i32
    return %c0_i32, %c0_i32_0 : i32, i32
  }
  func.func @transform_3(%arg0: i32) -> (i32, i32) {
    %c0_i32 = arith.constant 0 : i32
    %c0_i32_0 = arith.constant 0 : i32
    %c0_i32_1 = arith.constant 0 : i32
    return %c0_i32, %c0_i32_0 : i32, i32
  }
  func.func @transform_4(%arg0: i32) -> (i32, i32) {
    %c0_i32 = arith.constant 0 : i32
    %c0_i32_0 = arith.constant 0 : i32
    %c0_i32_1 = arith.constant 0 : i32
    return %c0_i32, %c0_i32_0 : i32, i32
  }
  func.func @transform_5(%arg0: i32) -> (i32, i32) {
    %c0_i32 = arith.constant 0 : i32
    %c0_i32_0 = arith.constant 0 : i32
    return %arg0, %c0_i32 : i32, i32
  }
}

</mosaic_0001>

<llo_original>
// kernel: tpu_custom_call.1
$region0: #{tpu_custom_call.1}
  #allocation0 [shape = 'u32[]', space=smem, size = 0x4, offset = 0x4, fixed_abs, tag = 'smem constant byte address 0x4 - core index']
  #allocation1 [shape = 'u32[144,128]{1,0:T(1,128)}', space=vmem, size = 0x12000, scoped, tag = 'internal scratch']
  %s0 = inlined_call_operand.hbm [shape: f32[400,128], index: 0, kind: input, shape index: {}]
  %s1 = inlined_call_operand.hbm [shape: f32[128,384], index: 1, kind: input, shape index: {}]
  %s2 = inlined_call_operand.vmem [shape: f32[1,384], index: 2, kind: input, shape index: {}]
  %s3 = inlined_call_operand.hbm [shape: f32[384,128], index: 3, kind: input, shape index: {}]
  %s4 = inlined_call_operand.vmem [shape: f32[1,128], index: 4, kind: input, shape index: {}]
  %s5 = inlined_call_operand.hbm [shape: f32[400,128], index: 5, kind: output, shape index: {}]
  %s6 = sld [smem:[#allocation0]]
  $region65: #{tpu_custom_call.1} parent=0
    _
  %s8 = ssub.s32 1, %s6
  %s9 = scalar_select 0, %s8, %s6
  $region1: #{tpu_custom_call.1} parent=0
    #allocation2 [shape = 'u8[204800]{0}', space=vmem, size = 0x32000, scoped, tag = 'input window, operand 0']
    #allocation3 [shape = 's32[2]{0}', space=sflag, size = 0x8, scoped, tag = 'scoped memory for tpu_custom_call.1']
    #allocation4 [shape = 's32[2]{0}', space=sflag, size = 0x8, scoped, tag = 'scoped memory for tpu_custom_call.1']
    #allocation5 [shape = 'u8[196608]{0}', space=vmem, size = 0x30000, scoped, tag = 'input window, operand 1, single buffered']
    #allocation6 [shape = 's32[1]{0}', space=sflag, size = 0x4, scoped, tag = 'scoped memory for tpu_custom_call.1']
    #allocation7 [shape = 'u8[196608]{0}', space=vmem, size = 0x30000, scoped, tag = 'input window, operand 3, single buffered']
    #allocation8 [shape = 'u8[204800]{0}', space=vmem, size = 0x32000, scoped, tag = 'output window, operand 0']
    %10 = vsyncpa [#allocation3], 0
    %s11 = scalar_lea.sflag [#allocation3], 1
    %12 = vsyncpa %s11, 0
    %13 = vsyncpa [#allocation6], 0
    %14 = vsyncpa [#allocation4], 0
    %s15 = scalar_lea.sflag [#allocation4], 1
    %16 = vsyncpa %s15, 0
    loop: start=0, step=1, limit=4
    $region2: #{tpu_custom_call.1} parent=1 // loop_pre_header
      _
    $region3: #{tpu_custom_call.1} parent=1 // loop_header
      %s18 = sphi 0, %s22
      %p19 = scmp.ge.s32.totalorder %s18, 4
      %s28 = sphi 0, %s30
      %s31 = sphi 0, %s28
      %s32 = sphi 0, %s31
      %s48 = sphi 0, %s32
      %s52 = sphi 0, %s52
      %s54 = sphi 0, %s52
      %s55 = sphi 0, %s54
      %s69 = sphi 0, %s55
      %s73 = sphi 0, %s73
      %s75 = sphi 0, %s73
      %s76 = sphi 0, %s75
      %s90 = sphi 0, %s76
      %s94 = sphi 0, %s94
      %s96 = sphi 0, %s94
      %s97 = sphi 0, %s96
      %s111 = sphi 0, %s97
      %s115 = sphi 0, %s115
      %s117 = sphi 0, %s115
      %s118 = sphi 0, %s117
      %s132 = sphi 0, %s118
      %s138 = sphi 0, %s140
      %s141 = sphi 0, %s138
      %s142 = sphi 0, %s141
      %s158 = sphi 0, %s142
    $region4: #{tpu_custom_call.1} parent=1 // loop_header_branch
      %21 = sbr.rel (%p19) target = $region8
    $region5: #{tpu_custom_call.1} parent=1 // loop_body
      %s23 = ssub.s32 %s18, 1
      %s24 = ssub.s32 %s18, 2
      %s25 = sadd.s32 %s18, 1
      %s26 = ssub.s32 %s18, %s25
      %p27 = scmp.eq.s32.totalorder %s26, 0
      %s29 = sadd.s32 %s28, 1
      %s30 = scalar_select %p27, %s28, %s29
      %p33 = pneg %p27
      %p34 = scmp.eq.s32.totalorder %s18, 1
      %p35 = por %p33, %p34
      %p36 = scmp.ne.s32.totalorder %s28, %s31
      %p37 = scmp.eq.s32.totalorder %s18, 0
      %p38 = por %p36, %p37
      %p39 = scmp.ne.s32.totalorder %s28, %s31
      %p40 = scmp.eq.s32.totalorder %s23, 1
      %p41 = por %p39, %p40
      %p42 = scmp.ne.s32.totalorder %s31, %s32
      %p43 = scmp.eq.s32.totalorder %s23, 0
      %p44 = por %p42, %p43
      %p45 = scmp.ne.s32.totalorder %s31, %s32
      %p46 = scmp.eq.s32.totalorder %s24, 1
      %p47 = por %p45, %p46
      %p49 = scmp.ne.s32.totalorder %s32, %s48
      %p50 = scmp.eq.s32.totalorder %s24, 0
      %p51 = por %p49, %p50
      %s53 = sadd.s32 %s52, 1
      %p56 = scmp.eq.s32.totalorder %s18, 1
      %p57 = scmp.ne.s32.totalorder %s52, %s54
      %p58 = scmp.eq.s32.totalorder %s18, 0
      %p59 = por %p57, %p58
      %p60 = scmp.ne.s32.totalorder %s52, %s54
      %p61 = scmp.eq.s32.totalorder %s23, 1
      %p62 = por %p60, %p61
      %p63 = scmp.ne.s32.totalorder %s54, %s55
      %p64 = scmp.eq.s32.totalorder %s23, 0
      %p65 = por %p63, %p64
      %p66 = scmp.ne.s32.totalorder %s54, %s55
      %p67 = scmp.eq.s32.totalorder %s24, 1
      %p68 = por %p66, %p67
      %p70 = scmp.ne.s32.totalorder %s55, %s69
      %p71 = scmp.eq.s32.totalorder %s24, 0
      %p72 = por %p70, %p71
      %s74 = sadd.s32 %s73, 1
      %p77 = scmp.eq.s32.totalorder %s18, 1
      %p78 = scmp.ne.s32.totalorder %s73, %s75
      %p79 = scmp.eq.s32.totalorder %s18, 0
      %p80 = por %p78, %p79
      %p81 = scmp.ne.s32.totalorder %s73, %s75
      %p82 = scmp.eq.s32.totalorder %s23, 1
      %p83 = por %p81, %p82
      %p84 = scmp.ne.s32.totalorder %s75, %s76
      %p85 = scmp.eq.s32.totalorder %s23, 0
      %p86 = por %p84, %p85
      %p87 = scmp.ne.s32.totalorder %s75, %s76
      %p88 = scmp.eq.s32.totalorder %s24, 1
      %p89 = por %p87, %p88
      %p91 = scmp.ne.s32.totalorder %s76, %s90
      %p92 = scmp.eq.s32.totalorder %s24, 0
      %p93 = por %p91, %p92
      %s95 = sadd.s32 %s94, 1
      %p98 = scmp.eq.s32.totalorder %s18, 1
      %p99 = scmp.ne.s32.totalorder %s94, %s96
      %p100 = scmp.eq.s32.totalorder %s18, 0
      %p101 = por %p99, %p100
      %p102 = scmp.ne.s32.totalorder %s94, %s96
      %p103 = scmp.eq.s32.totalorder %s23, 1
      %p104 = por %p102, %p103
      %p105 = scmp.ne.s32.totalorder %s96, %s97
      %p106 = scmp.eq.s32.totalorder %s23, 0
      %p107 = por %p105, %p106
      %p108 = scmp.ne.s32.totalorder %s96, %s97
      %p109 = scmp.eq.s32.totalorder %s24, 1
      %p110 = por %p108, %p109
      %p112 = scmp.ne.s32.totalorder %s97, %s111
      %p113 = scmp.eq.s32.totalorder %s24, 0
      %p114 = por %p112, %p113
      %s116 = sadd.s32 %s115, 1
      %p119 = scmp.eq.s32.totalorder %s18, 1
      %p120 = scmp.ne.s32.totalorder %s115, %s117
      %p121 = scmp.eq.s32.totalorder %s18, 0
      %p122 = por %p120, %p121
      %p123 = scmp.ne.s32.totalorder %s115, %s117
      %p124 = scmp.eq.s32.totalorder %s23, 1
      %p125 = por %p123, %p124
      %p126 = scmp.ne.s32.totalorder %s117, %s118
      %p127 = scmp.eq.s32.totalorder %s23, 0
      %p128 = por %p126, %p127
      %p129 = scmp.ne.s32.totalorder %s117, %s118
      %p130 = scmp.eq.s32.totalorder %s24, 1
      %p131 = por %p129, %p130
      %p133 = scmp.ne.s32.totalorder %s118, %s132
      %p134 = scmp.eq.s32.totalorder %s24, 0
      %p135 = por %p133, %p134
      %s136 = ssub.s32 %s18, %s25
      %p137 = scmp.eq.s32.totalorder %s136, 0
      %s139 = sadd.s32 %s138, 1
      %s140 = scalar_select %p137, %s138, %s139
      %p143 = pneg %p137
      %p144 = scmp.eq.s32.totalorder %s18, 1
      %p145 = por %p143, %p144
      %p146 = scmp.ne.s32.totalorder %s138, %s141
      %p147 = scmp.eq.s32.totalorder %s18, 0
      %p148 = por %p146, %p147
      %p149 = scmp.ne.s32.totalorder %s138, %s141
      %p150 = scmp.eq.s32.totalorder %s23, 1
      %p151 = por %p149, %p150
      %p152 = scmp.ne.s32.totalorder %s141, %s142
      %p153 = scmp.eq.s32.totalorder %s23, 0
      %p154 = por %p152, %p153
      %p155 = scmp.ne.s32.totalorder %s141, %s142
      %p156 = scmp.eq.s32.totalorder %s24, 1
      %p157 = por %p155, %p156
      %p159 = scmp.ne.s32.totalorder %s142, %s158
      %p160 = scmp.eq.s32.totalorder %s24, 0
      %p161 = por %p159, %p160
      %p162 = scmp.le.s32.totalorder 1, %s18
      %p163 = scmp.lt.s32.totalorder %s18, 3
      %p164 = pnand %p162, %p163
      %p165 = pneg %p164
      // Predicated region
      $region9: #{tpu_custom_call.1} parent=5 // pred_check
        _
      $region10: #{tpu_custom_call.1} parent=5 // pred_check_branch
        %167 = sbr.rel (%p164) target = $region12
      $region11: #{tpu_custom_call.1} parent=5 // pred_region
        %s168 = ssub.s32 %s18, 1
        // Predicated region
        $region13: #{tpu_custom_call.1} parent=11 // pred_check
          %p169 = pneg %p65
        $region14: #{tpu_custom_call.1} parent=11 // pred_check_branch
          %171 = sbr.rel (%p169) target = $region16
        $region15: #{tpu_custom_call.1} parent=11 // pred_region
          %s173 = ssub.s32 6144, 6144
          %174 = vsyncadd [#allocation6], %s173
          %s175 = sshll.u32 [#allocation5], 4
          %s176 = int_to_ptr.vmem [resolvable:$true] %s175
          %181 = dma.hbm_to_vmem [thread:$0]  %s1, 6144, %s176, [#allocation6], 384, 384, 24
        $region16: #{tpu_custom_call.1} parent=11 // pred_fallthru
          _
        // Predicated region
        $region17: #{tpu_custom_call.1} parent=11 // pred_check
          %p182 = pneg %p86
        $region18: #{tpu_custom_call.1} parent=11 // pred_check_branch
          %184 = sbr.rel (%p182) target = $region20
        $region19: #{tpu_custom_call.1} parent=11 // pred_region
          _
        $region20: #{tpu_custom_call.1} parent=11 // pred_fallthru
          _
        // Predicated region
        $region21: #{tpu_custom_call.1} parent=11 // pred_check
          %p185 = pneg %p107
        $region22: #{tpu_custom_call.1} parent=11 // pred_check_branch
          %187 = sbr.rel (%p185) target = $region24
        $region23: #{tpu_custom_call.1} parent=11 // pred_region
          %s189 = ssub.s32 6144, 6144
          %190 = vsyncadd [#allocation6], %s189
          %s191 = sshll.u32 [#allocation7], 4
          %s192 = int_to_ptr.vmem [resolvable:$true] %s191
          %197 = dma.hbm_to_vmem [thread:$0]  %s3, 6144, %s192, [#allocation6], 128, 128, 8
        $region24: #{tpu_custom_call.1} parent=11 // pred_fallthru
          _
        // Predicated region
        $region25: #{tpu_custom_call.1} parent=11 // pred_check
          %p198 = pneg %p128
        $region26: #{tpu_custom_call.1} parent=11 // pred_check_branch
          %200 = sbr.rel (%p198) target = $region28
        $region27: #{tpu_custom_call.1} parent=11 // pred_region
          _
        $region28: #{tpu_custom_call.1} parent=11 // pred_fallthru
          _
      $region12: #{tpu_custom_call.1} parent=5 // pred_fallthru
        _
      %p201 = scmp.lt.s32.totalorder %s18, 2
      // Predicated region
      $region29: #{tpu_custom_call.1} parent=5 // pred_check
        %p202 = pneg %p201
      $region30: #{tpu_custom_call.1} parent=5 // pred_check_branch
        %204 = sbr.rel (%p202) target = $region32
      $region31: #{tpu_custom_call.1} parent=5 // pred_region
        // Predicated region
        $region33: #{tpu_custom_call.1} parent=31 // pred_check
          %p205 = pneg %p38
        $region34: #{tpu_custom_call.1} parent=31 // pred_check_branch
          %207 = sbr.rel (%p205) target = $region36
        $region35: #{tpu_custom_call.1} parent=31 // pred_region
          %s208 = sand.u32 %s28, 1
          %s209 = scalar_lea.sflag [#allocation3], %s208
          %s210 = sand.u32 %s28, 1
          %s211 = smul.addr %s210, 200
          %s212 = scalar_lea.vmem [#allocation2], %s211
          %s213 = smul.u32 25, %s18
          %s215 = ssub.s32 3200, 3200
          %216 = vsyncadd %s209, %s215
          %s217 = smul.addr %s213, 128
          %s218 = scalar_lea.hbm %s0, %s217
          %s219 = sshll.u32 %s212, 4
          %s220 = int_to_ptr.vmem [resolvable:$true] %s219
          %225 = dma.hbm_to_vmem [thread:$0]  %s218, 3200, %s220, %s209, 128, 128, 8
        $region36: #{tpu_custom_call.1} parent=31 // pred_fallthru
          _
      $region32: #{tpu_custom_call.1} parent=5 // pred_fallthru
        _
      %p226 = scmp.le.s32.totalorder 1, %s18
      %p227 = scmp.lt.s32.totalorder %s18, 3
      %p228 = pnand %p226, %p227
      %p229 = pneg %p228
      // Predicated region
      $region37: #{tpu_custom_call.1} parent=5 // pred_check
        _
      $region38: #{tpu_custom_call.1} parent=5 // pred_check_branch
        %231 = sbr.rel (%p228) target = $region40
      $region39: #{tpu_custom_call.1} parent=5 // pred_region
        %s232 = ssub.s32 %s18, 1
        %s233 = sand.u32 %s31, 1
        %s234 = scalar_lea.sflag [#allocation3], %s233
        %s235 = sand.u32 %s31, 1
        %s236 = smul.addr %s235, 200
        %s237 = scalar_lea.vmem [#allocation2], %s236
        // Predicated region
        $region41: #{tpu_custom_call.1} parent=39 // pred_check
          %p238 = pneg %p44
        $region42: #{tpu_custom_call.1} parent=39 // pred_check_branch
          %240 = sbr.rel (%p238) target = $region44
        $region43: #{tpu_custom_call.1} parent=39 // pred_region
          %241 = dma.done %s234, 3200
        $region44: #{tpu_custom_call.1} parent=39 // pred_fallthru
          _
        // Predicated region
        $region45: #{tpu_custom_call.1} parent=39 // pred_check
          %p242 = pneg %p65
        $region46: #{tpu_custom_call.1} parent=39 // pred_check_branch
          %244 = sbr.rel (%p242) target = $region48
        $region47: #{tpu_custom_call.1} parent=39 // pred_region
          %245 = dma.done [#allocation6], 6144
        $region48: #{tpu_custom_call.1} parent=39 // pred_fallthru
          _
        // Predicated region
        $region49: #{tpu_custom_call.1} parent=39 // pred_check
          %p246 = pneg %p107
        $region50: #{tpu_custom_call.1} parent=39 // pred_check_branch
          %248 = sbr.rel (%p246) target = $region52
        $region51: #{tpu_custom_call.1} parent=39 // pred_region
          %249 = dma.done [#allocation6], 6144
        $region52: #{tpu_custom_call.1} parent=39 // pred_fallthru
          _
        %s250 = sand.u32 %s31, 1
        %s251 = scalar_lea.sflag [#allocation3], %s250
        %s252 = sand.u32 %s31, 1
        %s253 = smul.addr %s252, 200
        %s254 = scalar_lea.vmem [#allocation2], %s253
        %p255 = pneg %p44
        %p256 = pneg %p41
        %p257 = pneg %p65
        %p258 = pneg %p62
        %p259 = pneg %p86
        %p260 = pneg %p83
        %p261 = pneg %p107
        %p262 = pneg %p104
        %p263 = pneg %p128
        %p264 = pneg %p125
        %p265 = pneg %p154
        %p266 = pneg %p151
        %s267 = sand.u32 %s141, 1
        %s268 = scalar_lea.sflag [#allocation4], %s267
        %s269 = sand.u32 %s141, 1
        %s270 = smul.addr %s269, 200
        %s271 = scalar_lea.vmem [#allocation8], %s270
        %s272 = smul.u32 25, %s23
        %s273 = smul.u32 25, %s23
        %v274 = vld [vmem:[%s237] sm:$0xff]
        %v275 = vld [vmem:[%s237 + $0x8] sm:$0xff]
        %v276 = vld [vmem:[%s237 + $0x10] sm:$0xff]
        %v277 = vld [vmem:[%s237 + $0x18] sm:$0xff]
        %v278 = vld [vmem:[%s237 + $0x20] sm:$0xff]
        %v279 = vld [vmem:[%s237 + $0x28] sm:$0xff]
        %v280 = vld [vmem:[%s237 + $0x30] sm:$0xff]
        %v281 = vld [vmem:[%s237 + $0x38] sm:$0xff]
        %v282 = vld [vmem:[%s237 + $0x40] sm:$0xff]
        %v283 = vld [vmem:[%s237 + $0x48] sm:$0xff]
        %v284 = vld [vmem:[%s237 + $0x50] sm:$0xff]
        %v285 = vld [vmem:[%s237 + $0x58] sm:$0xff]
        %v286 = vld [vmem:[%s237 + $0x60] sm:$0xff]
        %v287 = vld [vmem:[%s237 + $0x68] sm:$0xff]
        %v288 = vld [vmem:[%s237 + $0x70] sm:$0xff]
        %v289 = vld [vmem:[%s237 + $0x78] sm:$0xff]
        %v290 = vld [vmem:[%s237 + $0x80] sm:$0xff]
        %v291 = vld [vmem:[%s237 + $0x88] sm:$0xff]
        %v292 = vld [vmem:[%s237 + $0x90] sm:$0xff]
        %v293 = vld [vmem:[%s237 + $0x98] sm:$0xff]
        %v294 = vld [vmem:[%s237 + $0xa0] sm:$0xff]
        %v295 = vld [vmem:[%s237 + $0xa8] sm:$0xff]
        %v296 = vld [vmem:[%s237 + $0xb0] sm:$0xff]
        %v297 = vld [vmem:[%s237 + $0xb8] sm:$0xff]
        %v298 = vld [vmem:[%s237 + $0xc0] sm:$0xff]
        %v299 = vld [vmem:[#allocation5] sm:$0xff]
        %v300 = vld [vmem:[#allocation5 + $0x8] sm:$0xff]
        %v301 = vld [vmem:[#allocation5 + $0x10] sm:$0xff]
        %v302 = vld [vmem:[#allocation5 + $0x18] sm:$0xff]
        %v303 = vld [vmem:[#allocation5 + $0x20] sm:$0xff]
        %v304 = vld [vmem:[#allocation5 + $0x28] sm:$0xff]
        %v305 = vld [vmem:[#allocation5 + $0x30] sm:$0xff]
        %v306 = vld [vmem:[#allocation5 + $0x38] sm:$0xff]
        %v307 = vld [vmem:[#allocation5 + $0x40] sm:$0xff]
        %v308 = vld [vmem:[#allocation5 + $0x48] sm:$0xff]
        %v309 = vld [vmem:[#allocation5 + $0x50] sm:$0xff]
        %v310 = vld [vmem:[#allocation5 + $0x58] sm:$0xff]
        %v311 = vld [vmem:[#allocation5 + $0x60] sm:$0xff]
        %v312 = vld [vmem:[#allocation5 + $0x68] sm:$0xff]
        %v313 = vld [vmem:[#allocation5 + $0x70] sm:$0xff]
        %v314 = vld [vmem:[#allocation5 + $0x78] sm:$0xff]
        %v315 = vld [vmem:[#allocation5 + $0x80] sm:$0xff]
        %v316 = vld [vmem:[#allocation5 + $0x88] sm:$0xff]
        %v317 = vld [vmem:[#allocation5 + $0x90] sm:$0xff]
        %v318 = vld [vmem:[#allocation5 + $0x98] sm:$0xff]
        %v319 = vld [vmem:[#allocation5 + $0xa0] sm:$0xff]
        %v320 = vld [vmem:[#allocation5 + $0xa8] sm:$0xff]
        %v321 = vld [vmem:[#allocation5 + $0xb0] sm:$0xff]
        %v322 = vld [vmem:[#allocation5 + $0xb8] sm:$0xff]
        %v323 = vld [vmem:[#allocation5 + $0xc0] sm:$0xff]
        %v324 = vld [vmem:[#allocation5 + $0xc8] sm:$0xff]
        %v325 = vld [vmem:[#allocation5 + $0xd0] sm:$0xff]
        %v326 = vld [vmem:[#allocation5 + $0xd8] sm:$0xff]
        %v327 = vld [vmem:[#allocation5 + $0xe0] sm:$0xff]
        %v328 = vld [vmem:[#allocation5 + $0xe8] sm:$0xff]
        %v329 = vld [vmem:[#allocation5 + $0xf0] sm:$0xff]
        %v330 = vld [vmem:[#allocation5 + $0xf8] sm:$0xff]
        %v331 = vld [vmem:[#allocation5 + $0x100] sm:$0xff]
        %v332 = vld [vmem:[#allocation5 + $0x108] sm:$0xff]
        %v333 = vld [vmem:[#allocation5 + $0x110] sm:$0xff]
        %v334 = vld [vmem:[#allocation5 + $0x118] sm:$0xff]
        %v335 = vld [vmem:[#allocation5 + $0x120] sm:$0xff]
        %v336 = vld [vmem:[#allocation5 + $0x128] sm:$0xff]
        %v337 = vld [vmem:[#allocation5 + $0x130] sm:$0xff]
        %v338 = vld [vmem:[#allocation5 + $0x138] sm:$0xff]
        %v339 = vld [vmem:[#allocation5 + $0x140] sm:$0xff]
        %v340 = vld [vmem:[#allocation5 + $0x148] sm:$0xff]
        %v341 = vld [vmem:[#allocation5 + $0x150] sm:$0xff]
        %v342 = vld [vmem:[#allocation5 + $0x158] sm:$0xff]
        %v343 = vld [vmem:[#allocation5 + $0x160] sm:$0xff]
        %v344 = vld [vmem:[#allocation5 + $0x168] sm:$0xff]
        %v345 = vld [vmem:[#allocation5 + $0x170] sm:$0xff]
        %v346 = vld [vmem:[#allocation5 + $0x178] sm:$0xff]
        %v347 = vld [vmem:[%s2] sm:$0x7]
        %v349 = vlaneseq
        %v350 = vshrl.u32 %v349, 7
        %v351 = vsub.s32 0, %v350
        %v352 = vrot.slane %v347, %v351
        %v353 = vlaneseq
        %v354 = vshrl.u32 %v353, 7
        %v355 = vsub.s32 1, %v354
        %v356 = vrot.slane %v347, %v355
        %v357 = vlaneseq
        %v358 = vshrl.u32 %v357, 7
        %v359 = vsub.s32 2, %v358
        %v360 = vrot.slane %v347, %v359
        %364 = vmatprep.subr.mxu0 %v345
        %365 = vmatpush1.msra.mxu0 %v344
        %366 = vmatprep.subr.mxu0 %v342
        %367 = vmatpush1.msra.mxu0 %v341
        %368 = vmatprep.subr.mxu0 %v339
        %369 = vmatpush1.msra.mxu0 %v338
        %370 = vmatprep.subr.mxu0 %v336
        %371 = vmatpush1.msra.mxu0 %v335
        %372 = vmatprep.subr.mxu0 %v333
        %373 = vmatpush1.msra.mxu0 %v332
        %374 = vmatprep.subr.mxu0 %v330
        %375 = vmatpush1.msra.mxu0 %v329
        %376 = vmatprep.subr.mxu0 %v327
        %377 = vmatpush1.msra.mxu0 %v326
        %378 = vmatprep.subr.mxu0 %v324
        %379 = vmatpush1.msra.mxu0 %v323
        %380 = vmatprep.subr.mxu0 %v321
        %381 = vmatpush1.msra.mxu0 %v320
        %382 = vmatprep.subr.mxu0 %v318
        %383 = vmatpush1.msra.mxu0 %v317
        %384 = vmatprep.subr.mxu0 %v315
        %385 = vmatpush1.msra.mxu0 %v314
        %386 = vmatprep.subr.mxu0 %v312
        %387 = vmatpush1.msra.mxu0 %v311
        %388 = vmatprep.subr.mxu0 %v309
        %389 = vmatpush1.msra.mxu0 %v308
        %390 = vmatprep.subr.mxu0 %v306
        %391 = vmatpush1.msra.mxu0 %v305
        %392 = vmatprep.subr.mxu0 %v303
        %393 = vmatpush1.msra.mxu0 %v302
        %394 = vmatprep.subr.mxu0 %v300
        %395 = vmatpush1.msra.mxu0 %v299
        %396 = vmatprep.subr.mxu0 0.0
        %397 = vmatpush2.msra.mxu0 0.0
        %398 = vmatprep.subr.mxu0 0.0
        %399 = vmatpush2.msra.mxu0 0.0
        %400 = vmatprep.subr.mxu0 0.0
        %401 = vmatpush2.msra.mxu0 0.0
        %402 = vmatprep.subr.mxu0 0.0
        %403 = vmatpush2.msra.mxu0 0.0
        %404 = vmatprep.subr.mxu0 0.0
        %405 = vmatpush2.msra.mxu0 0.0
        %406 = vmatprep.subr.mxu0 0.0
        %407 = vmatpush2.msra.mxu0 0.0
        %408 = vmatprep.subr.mxu0 0.0
        %409 = vmatpush2.msra.mxu0 0.0
        %410 = vmatprep.subr.mxu0 0.0
        %411 = vmatpush2.msra.mxu0 0.0
        %412 = vmatprep.subr.mxu0 0.0
        %413 = vmatpush2.msra.mxu0 0.0
        %414 = vmatprep.subr.mxu0 0.0
        %415 = vmatpush2.msra.mxu0 0.0
        %416 = vmatprep.subr.mxu0 0.0
        %417 = vmatpush2.msra.mxu0 0.0
        %418 = vmatprep.subr.mxu0 0.0
        %419 = vmatpush2.msra.mxu0 0.0
        %420 = vmatprep.subr.mxu0 0.0
        %421 = vmatpush2.msra.mxu0 0.0
        %422 = vmatprep.subr.mxu0 0.0
        %423 = vmatpush2.msra.mxu0 0.0
        %424 = vmatprep.subr.mxu0 0.0
        %425 = vmatpush2.msra.mxu0 0.0
        %426 = vmatprep.subr.mxu0 0.0
        %427 = vmatpush2.msra.mxu0 0.0
        %428 = vmatprep.mubr.f32.mxu0 0.0
        %429 = vmatmul.mubr.f32.gmra.mxu0 %v274
        %v430 = vpop.f32.mrf.mxu0
        %v431 = vadd.f32 %v352, %v430
        %v432 = vpop.f32.mrf.mxu0
        %v433 = vadd.f32 %v356, %v432
        %434 = vmatprep.mubr.f32.mxu0 0.0
        %435 = vmatmul.mubr.f32.gmra.mxu0 %v275
        %v436 = vpop.f32.mrf.mxu0
        %v437 = vadd.f32 %v352, %v436
        %v438 = vpop.f32.mrf.mxu0
        %v439 = vadd.f32 %v356, %v438
        %440 = vmatprep.mubr.f32.mxu0 0.0
        %441 = vmatmul.mubr.f32.gmra.mxu0 %v276
        %v442 = vpop.f32.mrf.mxu0
        %v443 = vadd.f32 %v352, %v442
        %v444 = vpop.f32.mrf.mxu0
        %v445 = vadd.f32 %v356, %v444
        %446 = vmatprep.mubr.f32.mxu0 0.0
        %447 = vmatmul.mubr.f32.gmra.mxu0 %v277
        %v448 = vpop.f32.mrf.mxu0
        %v449 = vadd.f32 %v352, %v448
        %v450 = vpop.f32.mrf.mxu0
        %v451 = vadd.f32 %v356, %v450
        %452 = vmatprep.mubr.f32.mxu0 0.0
        %453 = vmatmul.mubr.f32.gmra.mxu0 %v278
        %v454 = vpop.f32.mrf.mxu0
        %v455 = vadd.f32 %v352, %v454
        %v456 = vpop.f32.mrf.mxu0
        %v457 = vadd.f32 %v356, %v456
        %458 = vmatprep.mubr.f32.mxu0 0.0
        %459 = vmatmul.mubr.f32.gmra.mxu0 %v279
        %v460 = vpop.f32.mrf.mxu0
        %v461 = vadd.f32 %v352, %v460
        %v462 = vpop.f32.mrf.mxu0
        %v463 = vadd.f32 %v356, %v462
        %464 = vmatprep.mubr.f32.mxu0 0.0
        %465 = vmatmul.mubr.f32.gmra.mxu0 %v280
        %v466 = vpop.f32.mrf.mxu0
        %v467 = vadd.f32 %v352, %v466
        %v468 = vpop.f32.mrf.mxu0
        %v469 = vadd.f32 %v356, %v468
        %470 = vmatprep.mubr.f32.mxu0 0.0
        %471 = vmatmul.mubr.f32.gmra.mxu0 %v281
        %v472 = vpop.f32.mrf.mxu0
        %v473 = vadd.f32 %v352, %v472
        %v474 = vpop.f32.mrf.mxu0
        %v475 = vadd.f32 %v356, %v474
        %476 = vmatprep.mubr.f32.mxu0 0.0
        %477 = vmatmul.mubr.f32.gmra.mxu0 %v282
        %v478 = vpop.f32.mrf.mxu0
        %v479 = vadd.f32 %v352, %v478
        %v480 = vpop.f32.mrf.mxu0
        %v481 = vadd.f32 %v356, %v480
        %482 = vmatprep.mubr.f32.mxu0 0.0
        %483 = vmatmul.mubr.f32.gmra.mxu0 %v283
        %v484 = vpop.f32.mrf.mxu0
        %v485 = vadd.f32 %v352, %v484
        %v486 = vpop.f32.mrf.mxu0
        %v487 = vadd.f32 %v356, %v486
        %488 = vmatprep.mubr.f32.mxu0 0.0
        %489 = vmatmul.mubr.f32.gmra.mxu0 %v284
        %v490 = vpop.f32.mrf.mxu0
        %v491 = vadd.f32 %v352, %v490
        %v492 = vpop.f32.mrf.mxu0
        %v493 = vadd.f32 %v356, %v492
        %494 = vmatprep.mubr.f32.mxu0 0.0
        %495 = vmatmul.mubr.f32.gmra.mxu0 %v285
        %v496 = vpop.f32.mrf.mxu0
        %v497 = vadd.f32 %v352, %v496
        %v498 = vpop.f32.mrf.mxu0
        %v499 = vadd.f32 %v356, %v498
        %500 = vmatprep.mubr.f32.mxu0 0.0
        %501 = vmatmul.mubr.f32.gmra.mxu0 %v286
        %v502 = vpop.f32.mrf.mxu0
        %v503 = vadd.f32 %v352, %v502
        %v504 = vpop.f32.mrf.mxu0
        %v505 = vadd.f32 %v356, %v504
        %506 = vmatprep.mubr.f32.mxu0 0.0
        %507 = vmatmul.mubr.f32.gmra.mxu0 %v287
        %v508 = vpop.f32.mrf.mxu0
        %v509 = vadd.f32 %v352, %v508
        %v510 = vpop.f32.mrf.mxu0
        %v511 = vadd.f32 %v356, %v510
        %512 = vmatprep.mubr.f32.mxu0 0.0
        %513 = vmatmul.mubr.f32.gmra.mxu0 %v288
        %v514 = vpop.f32.mrf.mxu0
        %v515 = vadd.f32 %v352, %v514
        %v516 = vpop.f32.mrf.mxu0
        %v517 = vadd.f32 %v356, %v516
        %518 = vmatprep.mubr.f32.mxu0 0.0
        %519 = vmatmul.mubr.f32.gmra.mxu0 %v289
        %v520 = vpop.f32.mrf.mxu0
        %v521 = vadd.f32 %v352, %v520
        %v522 = vpop.f32.mrf.mxu0
        %v523 = vadd.f32 %v356, %v522
        %524 = vmatprep.mubr.f32.mxu0 0.0
        %525 = vmatmul.mubr.f32.gmra.mxu0 %v290
        %v526 = vpop.f32.mrf.mxu0
        %v527 = vadd.f32 %v352, %v526
        %v528 = vpop.f32.mrf.mxu0
        %v529 = vadd.f32 %v356, %v528
        %530 = vmatprep.mubr.f32.mxu0 0.0
        %531 = vmatmul.mubr.f32.gmra.mxu0 %v291
        %v532 = vpop.f32.mrf.mxu0
        %v533 = vadd.f32 %v352, %v532
        %v534 = vpop.f32.mrf.mxu0
        %v535 = vadd.f32 %v356, %v534
        %536 = vmatprep.mubr.f32.mxu0 0.0
        %537 = vmatmul.mubr.f32.gmra.mxu0 %v292
        %v538 = vpop.f32.mrf.mxu0
        %v539 = vadd.f32 %v352, %v538
        %v540 = vpop.f32.mrf.mxu0
        %v541 = vadd.f32 %v356, %v540
        %542 = vmatprep.mubr.f32.mxu0 0.0
        %543 = vmatmul.mubr.f32.gmra.mxu0 %v293
        %v544 = vpop.f32.mrf.mxu0
        %v545 = vadd.f32 %v352, %v544
        %v546 = vpop.f32.mrf.mxu0
        %v547 = vadd.f32 %v356, %v546
        %548 = vmatprep.mubr.f32.mxu0 0.0
        %549 = vmatmul.mubr.f32.gmra.mxu0 %v294
        %v550 = vpop.f32.mrf.mxu0
        %v551 = vadd.f32 %v352, %v550
        %v552 = vpop.f32.mrf.mxu0
        %v553 = vadd.f32 %v356, %v552
        %554 = vmatprep.mubr.f32.mxu0 0.0
        %555 = vmatmul.mubr.f32.gmra.mxu0 %v295
        %v556 = vpop.f32.mrf.mxu0
        %v557 = vadd.f32 %v352, %v556
        %v558 = vpop.f32.mrf.mxu0
        %v559 = vadd.f32 %v356, %v558
        %560 = vmatprep.mubr.f32.mxu0 0.0
        %561 = vmatmul.mubr.f32.gmra.mxu0 %v296
        %v562 = vpop.f32.mrf.mxu0
        %v563 = vadd.f32 %v352, %v562
        %v564 = vpop.f32.mrf.mxu0
        %v565 = vadd.f32 %v356, %v564
        %566 = vmatprep.mubr.f32.mxu0 0.0
        %567 = vmatmul.mubr.f32.gmra.mxu0 %v297
        %v568 = vpop.f32.mrf.mxu0
        %v569 = vadd.f32 %v352, %v568
        %v570 = vpop.f32.mrf.mxu0
        %v571 = vadd.f32 %v356, %v570
        %572 = vmatprep.mubr.f32.mxu0 0.0
        %573 = vmatmul.mubr.f32.gmra.mxu0 %v298
        %v574 = vpop.f32.mrf.mxu0
        %v575 = vadd.f32 %v352, %v574
        %v576 = vpop.f32.mrf.mxu0
        %v577 = vadd.f32 %v356, %v576
        %578 = vdwg.mxu0
        %579 = vmatprep.subr.mxu0 0.0
        %580 = vmatpush1.msra.mxu0 %v346
        %581 = vmatprep.subr.mxu0 0.0
        %582 = vmatpush1.msra.mxu0 %v343
        %583 = vmatprep.subr.mxu0 0.0
        %584 = vmatpush1.msra.mxu0 %v340
        %585 = vmatprep.subr.mxu0 0.0
        %586 = vmatpush1.msra.mxu0 %v337
        %587 = vmatprep.subr.mxu0 0.0
        %588 = vmatpush1.msra.mxu0 %v334
        %589 = vmatprep.subr.mxu0 0.0
        %590 = vmatpush1.msra.mxu0 %v331
        %591 = vmatprep.subr.mxu0 0.0
        %592 = vmatpush1.msra.mxu0 %v328
        %593 = vmatprep.subr.mxu0 0.0
        %594 = vmatpush1.msra.mxu0 %v325
        %595 = vmatprep.subr.mxu0 0.0
        %596 = vmatpush1.msra.mxu0 %v322
        %597 = vmatprep.subr.mxu0 0.0
        %598 = vmatpush1.msra.mxu0 %v319
        %599 = vmatprep.subr.mxu0 0.0
        %600 = vmatpush1.msra.mxu0 %v316
        %601 = vmatprep.subr.mxu0 0.0
        %602 = vmatpush1.msra.mxu0 %v313
        %603 = vmatprep.subr.mxu0 0.0
        %604 = vmatpush1.msra.mxu0 %v310
        %605 = vmatprep.subr.mxu0 0.0
        %606 = vmatpush1.msra.mxu0 %v307
        %607 = vmatprep.subr.mxu0 0.0
        %608 = vmatpush1.msra.mxu0 %v304
        %609 = vmatprep.subr.mxu0 0.0
        %610 = vmatpush1.msra.mxu0 %v301
        %611 = vmatprep.subr.mxu0 0.0
        %612 = vmatpush2.msra.mxu0 0.0
        %613 = vmatprep.subr.mxu0 0.0
        %614 = vmatpush2.msra.mxu0 0.0
        %615 = vmatprep.subr.mxu0 0.0
        %616 = vmatpush2.msra.mxu0 0.0
        %617 = vmatprep.subr.mxu0 0.0
        %618 = vmatpush2.msra.mxu0 0.0
        %619 = vmatprep.subr.mxu0 0.0
        %620 = vmatpush2.msra.mxu0 0.0
        %621 = vmatprep.subr.mxu0 0.0
        %622 = vmatpush2.msra.mxu0 0.0
        %623 = vmatprep.subr.mxu0 0.0
        %624 = vmatpush2.msra.mxu0 0.0
        %625 = vmatprep.subr.mxu0 0.0
        %626 = vmatpush2.msra.mxu0 0.0
        %627 = vmatprep.subr.mxu0 0.0
        %628 = vmatpush2.msra.mxu0 0.0
        %629 = vmatprep.subr.mxu0 0.0
        %630 = vmatpush2.msra.mxu0 0.0
        %631 = vmatprep.subr.mxu0 0.0
        %632 = vmatpush2.msra.mxu0 0.0
        %633 = vmatprep.subr.mxu0 0.0
        %634 = vmatpush2.msra.mxu0 0.0
        %635 = vmatprep.subr.mxu0 0.0
        %636 = vmatpush2.msra.mxu0 0.0
        %637 = vmatprep.subr.mxu0 0.0
        %638 = vmatpush2.msra.mxu0 0.0
        %639 = vmatprep.subr.mxu0 0.0
        %640 = vmatpush2.msra.mxu0 0.0
        %641 = vmatprep.subr.mxu0 0.0
        %642 = vmatpush2.msra.mxu0 0.0
        %643 = vmatprep.mubr.f32.mxu0 0.0
        %644 = vmatmul.mubr.f32.gmra.mxu0 %v274
        %v645 = vpop.f32.mrf.mxu0
        %v646 = vadd.f32 %v360, %v645
        %v647 = vpop.f32.mrf.mxu0
        %648 = vmatprep.mubr.f32.mxu0 0.0
        %649 = vmatmul.mubr.f32.gmra.mxu0 %v275
        %v650 = vpop.f32.mrf.mxu0
        %v651 = vadd.f32 %v360, %v650
        %v652 = vpop.f32.mrf.mxu0
        %653 = vmatprep.mubr.f32.mxu0 0.0
        %654 = vmatmul.mubr.f32.gmra.mxu0 %v276
        %v655 = vpop.f32.mrf.mxu0
        %v656 = vadd.f32 %v360, %v655
        %v657 = vpop.f32.mrf.mxu0
        %658 = vmatprep.mubr.f32.mxu0 0.0
        %659 = vmatmul.mubr.f32.gmra.mxu0 %v277
        %v660 = vpop.f32.mrf.mxu0
        %v661 = vadd.f32 %v360, %v660
        %v662 = vpop.f32.mrf.mxu0
        %663 = vmatprep.mubr.f32.mxu0 0.0
        %664 = vmatmul.mubr.f32.gmra.mxu0 %v278
        %v665 = vpop.f32.mrf.mxu0
        %v666 = vadd.f32 %v360, %v665
        %v667 = vpop.f32.mrf.mxu0
        %668 = vmatprep.mubr.f32.mxu0 0.0
        %669 = vmatmul.mubr.f32.gmra.mxu0 %v279
        %v670 = vpop.f32.mrf.mxu0
        %v671 = vadd.f32 %v360, %v670
        %v672 = vpop.f32.mrf.mxu0
        %673 = vmatprep.mubr.f32.mxu0 0.0
        %674 = vmatmul.mubr.f32.gmra.mxu0 %v280
        %v675 = vpop.f32.mrf.mxu0
        %v676 = vadd.f32 %v360, %v675
        %v677 = vpop.f32.mrf.mxu0
        %678 = vmatprep.mubr.f32.mxu0 0.0
        %679 = vmatmul.mubr.f32.gmra.mxu0 %v281
        %v680 = vpop.f32.mrf.mxu0
        %v681 = vadd.f32 %v360, %v680
        %v682 = vpop.f32.mrf.mxu0
        %683 = vmatprep.mubr.f32.mxu0 0.0
        %684 = vmatmul.mubr.f32.gmra.mxu0 %v282
        %v685 = vpop.f32.mrf.mxu0
        %v686 = vadd.f32 %v360, %v685
        %v687 = vpop.f32.mrf.mxu0
        %688 = vmatprep.mubr.f32.mxu0 0.0
        %689 = vmatmul.mubr.f32.gmra.mxu0 %v283
        %v690 = vpop.f32.mrf.mxu0
        %v691 = vadd.f32 %v360, %v690
        %v692 = vpop.f32.mrf.mxu0
        %693 = vmatprep.mubr.f32.mxu0 0.0
        %694 = vmatmul.mubr.f32.gmra.mxu0 %v284
        %v695 = vpop.f32.mrf.mxu0
        %v696 = vadd.f32 %v360, %v695
        %v697 = vpop.f32.mrf.mxu0
        %698 = vmatprep.mubr.f32.mxu0 0.0
        %699 = vmatmul.mubr.f32.gmra.mxu0 %v285
        %v700 = vpop.f32.mrf.mxu0
        %v701 = vadd.f32 %v360, %v700
        %v702 = vpop.f32.mrf.mxu0
        %703 = vmatprep.mubr.f32.mxu0 0.0
        %704 = vmatmul.mubr.f32.gmra.mxu0 %v286
        %v705 = vpop.f32.mrf.mxu0
        %v706 = vadd.f32 %v360, %v705
        %v707 = vpop.f32.mrf.mxu0
        %708 = vmatprep.mubr.f32.mxu0 0.0
        %709 = vmatmul.mubr.f32.gmra.mxu0 %v287
        %v710 = vpop.f32.mrf.mxu0
        %v711 = vadd.f32 %v360, %v710
        %v712 = vpop.f32.mrf.mxu0
        %713 = vmatprep.mubr.f32.mxu0 0.0
        %714 = vmatmul.mubr.f32.gmra.mxu0 %v288
        %v715 = vpop.f32.mrf.mxu0
        %v716 = vadd.f32 %v360, %v715
        %v717 = vpop.f32.mrf.mxu0
        %718 = vmatprep.mubr.f32.mxu0 0.0
        %719 = vmatmul.mubr.f32.gmra.mxu0 %v289
        %v720 = vpop.f32.mrf.mxu0
        %v721 = vadd.f32 %v360, %v720
        %v722 = vpop.f32.mrf.mxu0
        %723 = vmatprep.mubr.f32.mxu0 0.0
        %724 = vmatmul.mubr.f32.gmra.mxu0 %v290
        %v725 = vpop.f32.mrf.mxu0
        %v726 = vadd.f32 %v360, %v725
        %v727 = vpop.f32.mrf.mxu0
        %728 = vmatprep.mubr.f32.mxu0 0.0
        %729 = vmatmul.mubr.f32.gmra.mxu0 %v291
        %v730 = vpop.f32.mrf.mxu0
        %v731 = vadd.f32 %v360, %v730
        %v732 = vpop.f32.mrf.mxu0
        %733 = vmatprep.mubr.f32.mxu0 0.0
        %734 = vmatmul.mubr.f32.gmra.mxu0 %v292
        %v735 = vpop.f32.mrf.mxu0
        %v736 = vadd.f32 %v360, %v735
        %v737 = vpop.f32.mrf.mxu0
        %738 = vmatprep.mubr.f32.mxu0 0.0
        %739 = vmatmul.mubr.f32.gmra.mxu0 %v293
        %v740 = vpop.f32.mrf.mxu0
        %v741 = vadd.f32 %v360, %v740
        %v742 = vpop.f32.mrf.mxu0
        %743 = vmatprep.mubr.f32.mxu0 0.0
        %744 = vmatmul.mubr.f32.gmra.mxu0 %v294
        %v745 = vpop.f32.mrf.mxu0
        %v746 = vadd.f32 %v360, %v745
        %v747 = vpop.f32.mrf.mxu0
        %748 = vmatprep.mubr.f32.mxu0 0.0
        %749 = vmatmul.mubr.f32.gmra.mxu0 %v295
        %v750 = vpop.f32.mrf.mxu0
        %v751 = vadd.f32 %v360, %v750
        %v752 = vpop.f32.mrf.mxu0
        %753 = vmatprep.mubr.f32.mxu0 0.0
        %754 = vmatmul.mubr.f32.gmra.mxu0 %v296
        %v755 = vpop.f32.mrf.mxu0
        %v756 = vadd.f32 %v360, %v755
        %v757 = vpop.f32.mrf.mxu0
        %758 = vmatprep.mubr.f32.mxu0 0.0
        %759 = vmatmul.mubr.f32.gmra.mxu0 %v297
        %v760 = vpop.f32.mrf.mxu0
        %v761 = vadd.f32 %v360, %v760
        %v762 = vpop.f32.mrf.mxu0
        %763 = vmatprep.mubr.f32.mxu0 0.0
        %764 = vmatmul.mubr.f32.gmra.mxu0 %v298
        %v765 = vpop.f32.mrf.mxu0
        %v766 = vadd.f32 %v360, %v765
        %v767 = vpop.f32.mrf.mxu0
        %768 = vdwg.mxu0
        %v769 = vmul.f32 %v431, 0.5
        %v770 = vmul.f32 %v433, 0.5
        %v771 = vmul.f32 %v646, 0.5
        %v772 = vmul.f32 %v437, 0.5
        %v773 = vmul.f32 %v439, 0.5
        %v774 = vmul.f32 %v651, 0.5
        %v775 = vmul.f32 %v443, 0.5
        %v776 = vmul.f32 %v445, 0.5
        %v777 = vmul.f32 %v656, 0.5
        %v778 = vmul.f32 %v449, 0.5
        %v779 = vmul.f32 %v451, 0.5
        %v780 = vmul.f32 %v661, 0.5
        %v781 = vmul.f32 %v455, 0.5
        %v782 = vmul.f32 %v457, 0.5
        %v783 = vmul.f32 %v666, 0.5
        %v784 = vmul.f32 %v461, 0.5
        %v785 = vmul.f32 %v463, 0.5
        %v786 = vmul.f32 %v671, 0.5
        %v787 = vmul.f32 %v467, 0.5
        %v788 = vmul.f32 %v469, 0.5
        %v789 = vmul.f32 %v676, 0.5
        %v790 = vmul.f32 %v473, 0.5
        %v791 = vmul.f32 %v475, 0.5
        %v792 = vmul.f32 %v681, 0.5
        %v793 = vmul.f32 %v479, 0.5
        %v794 = vmul.f32 %v481, 0.5
        %v795 = vmul.f32 %v686, 0.5
        %v796 = vmul.f32 %v485, 0.5
        %v797 = vmul.f32 %v487, 0.5
        %v798 = vmul.f32 %v691, 0.5
        %v799 = vmul.f32 %v491, 0.5
        %v800 = vmul.f32 %v493, 0.5
        %v801 = vmul.f32 %v696, 0.5
        %v802 = vmul.f32 %v497, 0.5
        %v803 = vmul.f32 %v499, 0.5
        %v804 = vmul.f32 %v701, 0.5
        %v805 = vmul.f32 %v503, 0.5
        %v806 = vmul.f32 %v505, 0.5
        %v807 = vmul.f32 %v706, 0.5
        %v808 = vmul.f32 %v509, 0.5
        %v809 = vmul.f32 %v511, 0.5
        %v810 = vmul.f32 %v711, 0.5
        %v811 = vmul.f32 %v515, 0.5
        %v812 = vmul.f32 %v517, 0.5
        %v813 = vmul.f32 %v716, 0.5
        %v814 = vmul.f32 %v521, 0.5
        %v815 = vmul.f32 %v523, 0.5
        %v816 = vmul.f32 %v721, 0.5
        %v817 = vmul.f32 %v527, 0.5
        %v818 = vmul.f32 %v529, 0.5
        %v819 = vmul.f32 %v726, 0.5
        %v820 = vmul.f32 %v533, 0.5
        %v821 = vmul.f32 %v535, 0.5
        %v822 = vmul.f32 %v731, 0.5
        %v823 = vmul.f32 %v539, 0.5
        %v824 = vmul.f32 %v541, 0.5
        %v825 = vmul.f32 %v736, 0.5
        %v826 = vmul.f32 %v545, 0.5
        %v827 = vmul.f32 %v547, 0.5
        %v828 = vmul.f32 %v741, 0.5
        %v829 = vmul.f32 %v551, 0.5
        %v830 = vmul.f32 %v553, 0.5
        %v831 = vmul.f32 %v746, 0.5
        %v832 = vmul.f32 %v557, 0.5
        %v833 = vmul.f32 %v559, 0.5
        %v834 = vmul.f32 %v751, 0.5
        %v835 = vmul.f32 %v563, 0.5
        %v836 = vmul.f32 %v565, 0.5
        %v837 = vmul.f32 %v756, 0.5
        %v838 = vmul.f32 %v569, 0.5
        %v839 = vmul.f32 %v571, 0.5
        %v840 = vmul.f32 %v761, 0.5
        %v841 = vmul.f32 %v575, 0.5
        %v842 = vmul.f32 %v577, 0.5
        %v843 = vmul.f32 %v766, 0.5
        %v844 = vmul.f32 %v431, 0.70710677
        %v845 = vmul.f32 %v433, 0.70710677
        %v846 = vmul.f32 %v646, 0.70710677
        %v847 = vmul.f32 %v437, 0.70710677
        %v848 = vmul.f32 %v439, 0.70710677
        %v849 = vmul.f32 %v651, 0.70710677
        %v850 = vmul.f32 %v443, 0.70710677
        %v851 = vmul.f32 %v445, 0.70710677
        %v852 = vmul.f32 %v656, 0.70710677
        %v853 = vmul.f32 %v449, 0.70710677
        %v854 = vmul.f32 %v451, 0.70710677
        %v855 = vmul.f32 %v661, 0.70710677
        %v856 = vmul.f32 %v455, 0.70710677
        %v857 = vmul.f32 %v457, 0.70710677
        %v858 = vmul.f32 %v666, 0.70710677
        %v859 = vmul.f32 %v461, 0.70710677
        %v860 = vmul.f32 %v463, 0.70710677
        %v861 = vmul.f32 %v671, 0.70710677
        %v862 = vmul.f32 %v467, 0.70710677
        %v863 = vmul.f32 %v469, 0.70710677
        %v864 = vmul.f32 %v676, 0.70710677
        %v865 = vmul.f32 %v473, 0.70710677
        %v866 = vmul.f32 %v475, 0.70710677
        %v867 = vmul.f32 %v681, 0.70710677
        %v868 = vmul.f32 %v479, 0.70710677
        %v869 = vmul.f32 %v481, 0.70710677
        %v870 = vmul.f32 %v686, 0.70710677
        %v871 = vmul.f32 %v485, 0.70710677
        %v872 = vmul.f32 %v487, 0.70710677
        %v873 = vmul.f32 %v691, 0.70710677
        %v874 = vmul.f32 %v491, 0.70710677
        %v875 = vmul.f32 %v493, 0.70710677
        %v876 = vmul.f32 %v696, 0.70710677
        %v877 = vmul.f32 %v497, 0.70710677
        %v878 = vmul.f32 %v499, 0.70710677
        %v879 = vmul.f32 %v701, 0.70710677
        %v880 = vmul.f32 %v503, 0.70710677
        %v881 = vmul.f32 %v505, 0.70710677
        %v882 = vmul.f32 %v706, 0.70710677
        %v883 = vmul.f32 %v509, 0.70710677
        %v884 = vmul.f32 %v511, 0.70710677
        %v885 = vmul.f32 %v711, 0.70710677
        %v886 = vmul.f32 %v515, 0.70710677
        %v887 = vmul.f32 %v517, 0.70710677
        %v888 = vmul.f32 %v716, 0.70710677
        %v889 = vmul.f32 %v521, 0.70710677
        %v890 = vmul.f32 %v523, 0.70710677
        %v891 = vmul.f32 %v721, 0.70710677
        %v892 = vmul.f32 %v527, 0.70710677
        %v893 = vmul.f32 %v529, 0.70710677
        %v894 = vmul.f32 %v726, 0.70710677
        %v895 = vmul.f32 %v533, 0.70710677
        %v896 = vmul.f32 %v535, 0.70710677
        %v897 = vmul.f32 %v731, 0.70710677
        %v898 = vmul.f32 %v539, 0.70710677
        %v899 = vmul.f32 %v541, 0.70710677
        %v900 = vmul.f32 %v736, 0.70710677
        %v901 = vmul.f32 %v545, 0.70710677
        %v902 = vmul.f32 %v547, 0.70710677
        %v903 = vmul.f32 %v741, 0.70710677
        %v904 = vmul.f32 %v551, 0.70710677
        %v905 = vmul.f32 %v553, 0.70710677
        %v906 = vmul.f32 %v746, 0.70710677
        %v907 = vmul.f32 %v557, 0.70710677
        %v908 = vmul.f32 %v559, 0.70710677
        %v909 = vmul.f32 %v751, 0.70710677
        %v910 = vmul.f32 %v563, 0.70710677
        %v911 = vmul.f32 %v565, 0.70710677
        %v912 = vmul.f32 %v756, 0.70710677
        %v913 = vmul.f32 %v569, 0.70710677
        %v914 = vmul.f32 %v571, 0.70710677
        %v915 = vmul.f32 %v761, 0.70710677
        %v916 = vmul.f32 %v575, 0.70710677
        %v917 = vmul.f32 %v577, 0.70710677
        %v918 = vmul.f32 %v766, 0.70710677
        %v919 = verf.f32.pop %v844
        %v920 = verf.f32.pop %v845
        %v921 = verf.f32.pop %v846
        %v922 = verf.f32.pop %v847
        %v923 = verf.f32.pop %v848
        %v924 = verf.f32.pop %v849
        %v925 = verf.f32.pop %v850
        %v926 = verf.f32.pop %v851
        %v927 = verf.f32.pop %v852
        %v928 = verf.f32.pop %v853
        %v929 = verf.f32.pop %v854
        %v930 = verf.f32.pop %v855
        %v931 = verf.f32.pop %v856
        %v932 = verf.f32.pop %v857
        %v933 = verf.f32.pop %v858
        %v934 = verf.f32.pop %v859
        %v935 = verf.f32.pop %v860
        %v936 = verf.f32.pop %v861
        %v937 = verf.f32.pop %v862
        %v938 = verf.f32.pop %v863
        %v939 = verf.f32.pop %v864
        %v940 = verf.f32.pop %v865
        %v941 = verf.f32.pop %v866
        %v942 = verf.f32.pop %v867
        %v943 = verf.f32.pop %v868
        %v944 = verf.f32.pop %v869
        %v945 = verf.f32.pop %v870
        %v946 = verf.f32.pop %v871
        %v947 = verf.f32.pop %v872
        %v948 = verf.f32.pop %v873
        %v949 = verf.f32.pop %v874
        %v950 = verf.f32.pop %v875
        %v951 = verf.f32.pop %v876
        %v952 = verf.f32.pop %v877
        %v953 = verf.f32.pop %v878
        %v954 = verf.f32.pop %v879
        %v955 = verf.f32.pop %v880
        %v956 = verf.f32.pop %v881
        %v957 = verf.f32.pop %v882
        %v958 = verf.f32.pop %v883
        %v959 = verf.f32.pop %v884
        %v960 = verf.f32.pop %v885
        %v961 = verf.f32.pop %v886
        %v962 = verf.f32.pop %v887
        %v963 = verf.f32.pop %v888
        %v964 = verf.f32.pop %v889
        %v965 = verf.f32.pop %v890
        %v966 = verf.f32.pop %v891
        %v967 = verf.f32.pop %v892
        %v968 = verf.f32.pop %v893
        %v969 = verf.f32.pop %v894
        %v970 = verf.f32.pop %v895
        %v971 = verf.f32.pop %v896
        %v972 = verf.f32.pop %v897
        %v973 = verf.f32.pop %v898
        %v974 = verf.f32.pop %v899
        %v975 = verf.f32.pop %v900
        %v976 = verf.f32.pop %v901
        %v977 = verf.f32.pop %v902
        %v978 = verf.f32.pop %v903
        %v979 = verf.f32.pop %v904
        %v980 = verf.f32.pop %v905
        %v981 = verf.f32.pop %v906
        %v982 = verf.f32.pop %v907
        %v983 = verf.f32.pop %v908
        %v984 = verf.f32.pop %v909
        %v985 = verf.f32.pop %v910
        %v986 = verf.f32.pop %v911
        %v987 = verf.f32.pop %v912
        %v988 = verf.f32.pop %v913
        %v989 = verf.f32.pop %v914
        %v990 = verf.f32.pop %v915
        %v991 = verf.f32.pop %v916
        %v992 = verf.f32.pop %v917
        %v993 = verf.f32.pop %v918
        %v994 = vadd.f32 %v919, 1.0
        %v995 = vadd.f32 %v920, 1.0
        %v996 = vadd.f32 %v921, 1.0
        %v997 = vadd.f32 %v922, 1.0
        %v998 = vadd.f32 %v923, 1.0
        %v999 = vadd.f32 %v924, 1.0
        %v1000 = vadd.f32 %v925, 1.0
        %v1001 = vadd.f32 %v926, 1.0
        %v1002 = vadd.f32 %v927, 1.0
        %v1003 = vadd.f32 %v928, 1.0
        %v1004 = vadd.f32 %v929, 1.0
        %v1005 = vadd.f32 %v930, 1.0
        %v1006 = vadd.f32 %v931, 1.0
        %v1007 = vadd.f32 %v932, 1.0
        %v1008 = vadd.f32 %v933, 1.0
        %v1009 = vadd.f32 %v934, 1.0
        %v1010 = vadd.f32 %v935, 1.0
        %v1011 = vadd.f32 %v936, 1.0
        %v1012 = vadd.f32 %v937, 1.0
        %v1013 = vadd.f32 %v938, 1.0
        %v1014 = vadd.f32 %v939, 1.0
        %v1015 = vadd.f32 %v940, 1.0
        %v1016 = vadd.f32 %v941, 1.0
        %v1017 = vadd.f32 %v942, 1.0
        %v1018 = vadd.f32 %v943, 1.0
        %v1019 = vadd.f32 %v944, 1.0
        %v1020 = vadd.f32 %v945, 1.0
        %v1021 = vadd.f32 %v946, 1.0
        %v1022 = vadd.f32 %v947, 1.0
        %v1023 = vadd.f32 %v948, 1.0
        %v1024 = vadd.f32 %v949, 1.0
        %v1025 = vadd.f32 %v950, 1.0
        %v1026 = vadd.f32 %v951, 1.0
        %v1027 = vadd.f32 %v952, 1.0
        %v1028 = vadd.f32 %v953, 1.0
        %v1029 = vadd.f32 %v954, 1.0
        %v1030 = vadd.f32 %v955, 1.0
        %v1031 = vadd.f32 %v956, 1.0
        %v1032 = vadd.f32 %v957, 1.0
        %v1033 = vadd.f32 %v958, 1.0
        %v1034 = vadd.f32 %v959, 1.0
        %v1035 = vadd.f32 %v960, 1.0
        %v1036 = vadd.f32 %v961, 1.0
        %v1037 = vadd.f32 %v962, 1.0
        %v1038 = vadd.f32 %v963, 1.0
        %v1039 = vadd.f32 %v964, 1.0
        %v1040 = vadd.f32 %v965, 1.0
        %v1041 = vadd.f32 %v966, 1.0
        %v1042 = vadd.f32 %v967, 1.0
        %v1043 = vadd.f32 %v968, 1.0
        %v1044 = vadd.f32 %v969, 1.0
        %v1045 = vadd.f32 %v970, 1.0
        %v1046 = vadd.f32 %v971, 1.0
        %v1047 = vadd.f32 %v972, 1.0
        %v1048 = vadd.f32 %v973, 1.0
        %v1049 = vadd.f32 %v974, 1.0
        %v1050 = vadd.f32 %v975, 1.0
        %v1051 = vadd.f32 %v976, 1.0
        %v1052 = vadd.f32 %v977, 1.0
        %v1053 = vadd.f32 %v978, 1.0
        %v1054 = vadd.f32 %v979, 1.0
        %v1055 = vadd.f32 %v980, 1.0
        %v1056 = vadd.f32 %v981, 1.0
        %v1057 = vadd.f32 %v982, 1.0
        %v1058 = vadd.f32 %v983, 1.0
        %v1059 = vadd.f32 %v984, 1.0
        %v1060 = vadd.f32 %v985, 1.0
        %v1061 = vadd.f32 %v986, 1.0
        %v1062 = vadd.f32 %v987, 1.0
        %v1063 = vadd.f32 %v988, 1.0
        %v1064 = vadd.f32 %v989, 1.0
        %v1065 = vadd.f32 %v990, 1.0
        %v1066 = vadd.f32 %v991, 1.0
        %v1067 = vadd.f32 %v992, 1.0
        %v1068 = vadd.f32 %v993, 1.0
        %v1069 = vmul.f32 %v769, %v994
        %v1070 = vmul.f32 %v770, %v995
        %v1071 = vmul.f32 %v771, %v996
        %v1072 = vmul.f32 %v772, %v997
        %v1073 = vmul.f32 %v773, %v998
        %v1074 = vmul.f32 %v774, %v999
        %v1075 = vmul.f32 %v775, %v1000
        %v1076 = vmul.f32 %v776, %v1001
        %v1077 = vmul.f32 %v777, %v1002
        %v1078 = vmul.f32 %v778, %v1003
        %v1079 = vmul.f32 %v779, %v1004
        %v1080 = vmul.f32 %v780, %v1005
        %v1081 = vmul.f32 %v781, %v1006
        %v1082 = vmul.f32 %v782, %v1007
        %v1083 = vmul.f32 %v783, %v1008
        %v1084 = vmul.f32 %v784, %v1009
        %v1085 = vmul.f32 %v785, %v1010
        %v1086 = vmul.f32 %v786, %v1011
        %v1087 = vmul.f32 %v787, %v1012
        %v1088 = vmul.f32 %v788, %v1013
        %v1089 = vmul.f32 %v789, %v1014
        %v1090 = vmul.f32 %v790, %v1015
        %v1091 = vmul.f32 %v791, %v1016
        %v1092 = vmul.f32 %v792, %v1017
        %v1093 = vmul.f32 %v793, %v1018
        %v1094 = vmul.f32 %v794, %v1019
        %v1095 = vmul.f32 %v795, %v1020
        %v1096 = vmul.f32 %v796, %v1021
        %v1097 = vmul.f32 %v797, %v1022
        %v1098 = vmul.f32 %v798, %v1023
        %v1099 = vmul.f32 %v799, %v1024
        %v1100 = vmul.f32 %v800, %v1025
        %v1101 = vmul.f32 %v801, %v1026
        %v1102 = vmul.f32 %v802, %v1027
        %v1103 = vmul.f32 %v803, %v1028
        %v1104 = vmul.f32 %v804, %v1029
        %v1105 = vmul.f32 %v805, %v1030
        %v1106 = vmul.f32 %v806, %v1031
        %v1107 = vmul.f32 %v807, %v1032
        %v1108 = vmul.f32 %v808, %v1033
        %v1109 = vmul.f32 %v809, %v1034
        %v1110 = vmul.f32 %v810, %v1035
        %v1111 = vmul.f32 %v811, %v1036
        %v1112 = vmul.f32 %v812, %v1037
        %v1113 = vmul.f32 %v813, %v1038
        %v1114 = vmul.f32 %v814, %v1039
        %v1115 = vmul.f32 %v815, %v1040
        %v1116 = vmul.f32 %v816, %v1041
        %v1117 = vmul.f32 %v817, %v1042
        %v1118 = vmul.f32 %v818, %v1043
        %v1119 = vmul.f32 %v819, %v1044
        %v1120 = vmul.f32 %v820, %v1045
        %v1121 = vmul.f32 %v821, %v1046
        %v1122 = vmul.f32 %v822, %v1047
        %v1123 = vmul.f32 %v823, %v1048
        %v1124 = vmul.f32 %v824, %v1049
        %v1125 = vmul.f32 %v825, %v1050
        %v1126 = vmul.f32 %v826, %v1051
        %v1127 = vmul.f32 %v827, %v1052
        %v1128 = vmul.f32 %v828, %v1053
        %v1129 = vmul.f32 %v829, %v1054
        %v1130 = vmul.f32 %v830, %v1055
        %v1131 = vmul.f32 %v831, %v1056
        %v1132 = vmul.f32 %v832, %v1057
        %v1133 = vmul.f32 %v833, %v1058
        %v1134 = vmul.f32 %v834, %v1059
        %v1135 = vmul.f32 %v835, %v1060
        %v1136 = vmul.f32 %v836, %v1061
        %v1137 = vmul.f32 %v837, %v1062
        %v1138 = vmul.f32 %v838, %v1063
        %v1139 = vmul.f32 %v839, %v1064
        %v1140 = vmul.f32 %v840, %v1065
        %v1141 = vmul.f32 %v841, %v1066
        %v1142 = vmul.f32 %v842, %v1067
        %v1143 = vmul.f32 %v843, %v1068
        %v1144 = vld [vmem:[#allocation7] sm:$0xff]
        %v1145 = vld [vmem:[#allocation7 + $0x8] sm:$0xff]
        %v1146 = vld [vmem:[#allocation7 + $0x10] sm:$0xff]
        %v1147 = vld [vmem:[#allocation7 + $0x18] sm:$0xff]
        %v1148 = vld [vmem:[#allocation7 + $0x20] sm:$0xff]
        %v1149 = vld [vmem:[#allocation7 + $0x28] sm:$0xff]
        %v1150 = vld [vmem:[#allocation7 + $0x30] sm:$0xff]
        %v1151 = vld [vmem:[#allocation7 + $0x38] sm:$0xff]
        %v1152 = vld [vmem:[#allocation7 + $0x40] sm:$0xff]
        %v1153 = vld [vmem:[#allocation7 + $0x48] sm:$0xff]
        %v1154 = vld [vmem:[#allocation7 + $0x50] sm:$0xff]
        %v1155 = vld [vmem:[#allocation7 + $0x58] sm:$0xff]
        %v1156 = vld [vmem:[#allocation7 + $0x60] sm:$0xff]
        %v1157 = vld [vmem:[#allocation7 + $0x68] sm:$0xff]
        %v1158 = vld [vmem:[#allocation7 + $0x70] sm:$0xff]
        %v1159 = vld [vmem:[#allocation7 + $0x78] sm:$0xff]
        %v1160 = vld [vmem:[#allocation7 + $0x80] sm:$0xff]
        %v1161 = vld [vmem:[#allocation7 + $0x88] sm:$0xff]
        %v1162 = vld [vmem:[#allocation7 + $0x90] sm:$0xff]
        %v1163 = vld [vmem:[#allocation7 + $0x98] sm:$0xff]
        %v1164 = vld [vmem:[#allocation7 + $0xa0] sm:$0xff]
        %v1165 = vld [vmem:[#allocation7 + $0xa8] sm:$0xff]
        %v1166 = vld [vmem:[#allocation7 + $0xb0] sm:$0xff]
        %v1167 = vld [vmem:[#allocation7 + $0xb8] sm:$0xff]
        %v1168 = vld [vmem:[#allocation7 + $0xc0] sm:$0xff]
        %v1169 = vld [vmem:[#allocation7 + $0xc8] sm:$0xff]
        %v1170 = vld [vmem:[#allocation7 + $0xd0] sm:$0xff]
        %v1171 = vld [vmem:[#allocation7 + $0xd8] sm:$0xff]
        %v1172 = vld [vmem:[#allocation7 + $0xe0] sm:$0xff]
        %v1173 = vld [vmem:[#allocation7 + $0xe8] sm:$0xff]
        %v1174 = vld [vmem:[#allocation7 + $0xf0] sm:$0xff]
        %v1175 = vld [vmem:[#allocation7 + $0xf8] sm:$0xff]
        %v1176 = vld [vmem:[#allocation7 + $0x100] sm:$0xff]
        %v1177 = vld [vmem:[#allocation7 + $0x108] sm:$0xff]
        %v1178 = vld [vmem:[#allocation7 + $0x110] sm:$0xff]
        %v1179 = vld [vmem:[#allocation7 + $0x118] sm:$0xff]
        %v1180 = vld [vmem:[#allocation7 + $0x120] sm:$0xff]
        %v1181 = vld [vmem:[#allocation7 + $0x128] sm:$0xff]
        %v1182 = vld [vmem:[#allocation7 + $0x130] sm:$0xff]
        %v1183 = vld [vmem:[#allocation7 + $0x138] sm:$0xff]
        %v1184 = vld [vmem:[#allocation7 + $0x140] sm:$0xff]
        %v1185 = vld [vmem:[#allocation7 + $0x148] sm:$0xff]
        %v1186 = vld [vmem:[#allocation7 + $0x150] sm:$0xff]
        %v1187 = vld [vmem:[#allocation7 + $0x158] sm:$0xff]
        %v1188 = vld [vmem:[#allocation7 + $0x160] sm:$0xff]
        %v1189 = vld [vmem:[#allocation7 + $0x168] sm:$0xff]
        %v1190 = vld [vmem:[#allocation7 + $0x170] sm:$0xff]
        %v1191 = vld [vmem:[#allocation7 + $0x178] sm:$0xff]
        %v1192 = vld [vmem:[%s4] sm:$0x1]
        %v1194 = vlaneseq
        %v1195 = vshrl.u32 %v1194, 7
        %v1196 = vsub.s32 0, %v1195
        %v1197 = vrot.slane %v1192, %v1196
        %1199 = vmatprep.subr.mxu0 0.0
        %1200 = vmatpush1.msra.mxu0 %v1159
        %1201 = vmatprep.subr.mxu0 0.0
        %1202 = vmatpush1.msra.mxu0 %v1158
        %1203 = vmatprep.subr.mxu0 0.0
        %1204 = vmatpush1.msra.mxu0 %v1157
        %1205 = vmatprep.subr.mxu0 0.0
        %1206 = vmatpush1.msra.mxu0 %v1156
        %1207 = vmatprep.subr.mxu0 0.0
        %1208 = vmatpush1.msra.mxu0 %v1155
        %1209 = vmatprep.subr.mxu0 0.0
        %1210 = vmatpush1.msra.mxu0 %v1154
        %1211 = vmatprep.subr.mxu0 0.0
        %1212 = vmatpush1.msra.mxu0 %v1153
        %1213 = vmatprep.subr.mxu0 0.0
        %1214 = vmatpush1.msra.mxu0 %v1152
        %1215 = vmatprep.subr.mxu0 0.0
        %1216 = vmatpush1.msra.mxu0 %v1151
        %1217 = vmatprep.subr.mxu0 0.0
        %1218 = vmatpush1.msra.mxu0 %v1150
        %1219 = vmatprep.subr.mxu0 0.0
        %1220 = vmatpush1.msra.mxu0 %v1149
        %1221 = vmatprep.subr.mxu0 0.0
        %1222 = vmatpush1.msra.mxu0 %v1148
        %1223 = vmatprep.subr.mxu0 0.0
        %1224 = vmatpush1.msra.mxu0 %v1147
        %1225 = vmatprep.subr.mxu0 0.0
        %1226 = vmatpush1.msra.mxu0 %v1146
        %1227 = vmatprep.subr.mxu0 0.0
        %1228 = vmatpush1.msra.mxu0 %v1145
        %1229 = vmatprep.subr.mxu0 0.0
        %1230 = vmatpush1.msra.mxu0 %v1144
        %1231 = vmatprep.subr.mxu0 0.0
        %1232 = vmatpush2.msra.mxu0 %v1175
        %1233 = vmatprep.subr.mxu0 0.0
        %1234 = vmatpush2.msra.mxu0 %v1174
        %1235 = vmatprep.subr.mxu0 0.0
        %1236 = vmatpush2.msra.mxu0 %v1173
        %1237 = vmatprep.subr.mxu0 0.0
        %1238 = vmatpush2.msra.mxu0 %v1172
        %1239 = vmatprep.subr.mxu0 0.0
        %1240 = vmatpush2.msra.mxu0 %v1171
        %1241 = vmatprep.subr.mxu0 0.0
        %1242 = vmatpush2.msra.mxu0 %v1170
        %1243 = vmatprep.subr.mxu0 0.0
        %1244 = vmatpush2.msra.mxu0 %v1169
        %1245 = vmatprep.subr.mxu0 0.0
        %1246 = vmatpush2.msra.mxu0 %v1168
        %1247 = vmatprep.subr.mxu0 0.0
        %1248 = vmatpush2.msra.mxu0 %v1167
        %1249 = vmatprep.subr.mxu0 0.0
        %1250 = vmatpush2.msra.mxu0 %v1166
        %1251 = vmatprep.subr.mxu0 0.0
        %1252 = vmatpush2.msra.mxu0 %v1165
        %1253 = vmatprep.subr.mxu0 0.0
        %1254 = vmatpush2.msra.mxu0 %v1164
        %1255 = vmatprep.subr.mxu0 0.0
        %1256 = vmatpush2.msra.mxu0 %v1163
        %1257 = vmatprep.subr.mxu0 0.0
        %1258 = vmatpush2.msra.mxu0 %v1162
        %1259 = vmatprep.subr.mxu0 0.0
        %1260 = vmatpush2.msra.mxu0 %v1161
        %1261 = vmatprep.subr.mxu0 0.0
        %1262 = vmatpush2.msra.mxu0 %v1160
        %1263 = vmatprep.mubr.f32.mxu0 %v1070
        %1264 = vmatmul.mubr.f32.gmra.mxu0 %v1069
        %v1265 = vpop.f32.mrf.mxu0
        %v1266 = vadd.f32 %v1197, %v1265
        %v1267 = vpop.f32.mrf.mxu0
        %1268 = vmatprep.mubr.f32.mxu0 %v1073
        %1269 = vmatmul.mubr.f32.gmra.mxu0 %v1072
        %v1270 = vpop.f32.mrf.mxu0
        %v1271 = vadd.f32 %v1197, %v1270
        %v1272 = vpop.f32.mrf.mxu0
        %1273 = vmatprep.mubr.f32.mxu0 %v1076
        %1274 = vmatmul.mubr.f32.gmra.mxu0 %v1075
        %v1275 = vpop.f32.mrf.mxu0
        %v1276 = vadd.f32 %v1197, %v1275
        %v1277 = vpop.f32.mrf.mxu0
        %1278 = vmatprep.mubr.f32.mxu0 %v1079
        %1279 = vmatmul.mubr.f32.gmra.mxu0 %v1078
        %v1280 = vpop.f32.mrf.mxu0
        %v1281 = vadd.f32 %v1197, %v1280
        %v1282 = vpop.f32.mrf.mxu0
        %1283 = vmatprep.mubr.f32.mxu0 %v1082
        %1284 = vmatmul.mubr.f32.gmra.mxu0 %v1081
        %v1285 = vpop.f32.mrf.mxu0
        %v1286 = vadd.f32 %v1197, %v1285
        %v1287 = vpop.f32.mrf.mxu0
        %1288 = vmatprep.mubr.f32.mxu0 %v1085
        %1289 = vmatmul.mubr.f32.gmra.mxu0 %v1084
        %v1290 = vpop.f32.mrf.mxu0
        %v1291 = vadd.f32 %v1197, %v1290
        %v1292 = vpop.f32.mrf.mxu0
        %1293 = vmatprep.mubr.f32.mxu0 %v1088
        %1294 = vmatmul.mubr.f32.gmra.mxu0 %v1087
        %v1295 = vpop.f32.mrf.mxu0
        %v1296 = vadd.f32 %v1197, %v1295
        %v1297 = vpop.f32.mrf.mxu0
        %1298 = vmatprep.mubr.f32.mxu0 %v1091
        %1299 = vmatmul.mubr.f32.gmra.mxu0 %v1090
        %v1300 = vpop.f32.mrf.mxu0
        %v1301 = vadd.f32 %v1197, %v1300
        %v1302 = vpop.f32.mrf.mxu0
        %1303 = vmatprep.mubr.f32.mxu0 %v1094
        %1304 = vmatmul.mubr.f32.gmra.mxu0 %v1093
        %v1305 = vpop.f32.mrf.mxu0
        %v1306 = vadd.f32 %v1197, %v1305
        %v1307 = vpop.f32.mrf.mxu0
        %1308 = vmatprep.mubr.f32.mxu0 %v1097
        %1309 = vmatmul.mubr.f32.gmra.mxu0 %v1096
        %v1310 = vpop.f32.mrf.mxu0
        %v1311 = vadd.f32 %v1197, %v1310
        %v1312 = vpop.f32.mrf.mxu0
        %1313 = vmatprep.mubr.f32.mxu0 %v1100
        %1314 = vmatmul.mubr.f32.gmra.mxu0 %v1099
        %v1315 = vpop.f32.mrf.mxu0
        %v1316 = vadd.f32 %v1197, %v1315
        %v1317 = vpop.f32.mrf.mxu0
        %1318 = vmatprep.mubr.f32.mxu0 %v1103
        %1319 = vmatmul.mubr.f32.gmra.mxu0 %v1102
        %v1320 = vpop.f32.mrf.mxu0
        %v1321 = vadd.f32 %v1197, %v1320
        %v1322 = vpop.f32.mrf.mxu0
        %1323 = vmatprep.mubr.f32.mxu0 %v1106
        %1324 = vmatmul.mubr.f32.gmra.mxu0 %v1105
        %v1325 = vpop.f32.mrf.mxu0
        %v1326 = vadd.f32 %v1197, %v1325
        %v1327 = vpop.f32.mrf.mxu0
        %1328 = vmatprep.mubr.f32.mxu0 %v1109
        %1329 = vmatmul.mubr.f32.gmra.mxu0 %v1108
        %v1330 = vpop.f32.mrf.mxu0
        %v1331 = vadd.f32 %v1197, %v1330
        %v1332 = vpop.f32.mrf.mxu0
        %1333 = vmatprep.mubr.f32.mxu0 %v1112
        %1334 = vmatmul.mubr.f32.gmra.mxu0 %v1111
        %v1335 = vpop.f32.mrf.mxu0
        %v1336 = vadd.f32 %v1197, %v1335
        %v1337 = vpop.f32.mrf.mxu0
        %1338 = vmatprep.mubr.f32.mxu0 %v1115
        %1339 = vmatmul.mubr.f32.gmra.mxu0 %v1114
        %v1340 = vpop.f32.mrf.mxu0
        %v1341 = vadd.f32 %v1197, %v1340
        %v1342 = vpop.f32.mrf.mxu0
        %1343 = vmatprep.mubr.f32.mxu0 %v1118
        %1344 = vmatmul.mubr.f32.gmra.mxu0 %v1117
        %v1345 = vpop.f32.mrf.mxu0
        %v1346 = vadd.f32 %v1197, %v1345
        %v1347 = vpop.f32.mrf.mxu0
        %1348 = vmatprep.mubr.f32.mxu0 %v1121
        %1349 = vmatmul.mubr.f32.gmra.mxu0 %v1120
        %v1350 = vpop.f32.mrf.mxu0
        %v1351 = vadd.f32 %v1197, %v1350
        %v1352 = vpop.f32.mrf.mxu0
        %1353 = vmatprep.mubr.f32.mxu0 %v1124
        %1354 = vmatmul.mubr.f32.gmra.mxu0 %v1123
        %v1355 = vpop.f32.mrf.mxu0
        %v1356 = vadd.f32 %v1197, %v1355
        %v1357 = vpop.f32.mrf.mxu0
        %1358 = vmatprep.mubr.f32.mxu0 %v1127
        %1359 = vmatmul.mubr.f32.gmra.mxu0 %v1126
        %v1360 = vpop.f32.mrf.mxu0
        %v1361 = vadd.f32 %v1197, %v1360
        %v1362 = vpop.f32.mrf.mxu0
        %1363 = vmatprep.mubr.f32.mxu0 %v1130
        %1364 = vmatmul.mubr.f32.gmra.mxu0 %v1129
        %v1365 = vpop.f32.mrf.mxu0
        %v1366 = vadd.f32 %v1197, %v1365
        %v1367 = vpop.f32.mrf.mxu0
        %1368 = vmatprep.mubr.f32.mxu0 %v1133
        %1369 = vmatmul.mubr.f32.gmra.mxu0 %v1132
        %v1370 = vpop.f32.mrf.mxu0
        %v1371 = vadd.f32 %v1197, %v1370
        %v1372 = vpop.f32.mrf.mxu0
        %1373 = vmatprep.mubr.f32.mxu0 %v1136
        %1374 = vmatmul.mubr.f32.gmra.mxu0 %v1135
        %v1375 = vpop.f32.mrf.mxu0
        %v1376 = vadd.f32 %v1197, %v1375
        %v1377 = vpop.f32.mrf.mxu0
        %1378 = vmatprep.mubr.f32.mxu0 %v1139
        %1379 = vmatmul.mubr.f32.gmra.mxu0 %v1138
        %v1380 = vpop.f32.mrf.mxu0
        %v1381 = vadd.f32 %v1197, %v1380
        %v1382 = vpop.f32.mrf.mxu0
        %1383 = vmatprep.mubr.f32.mxu0 %v1142
        %1384 = vmatmul.mubr.f32.gmra.mxu0 %v1141
        %v1385 = vpop.f32.mrf.mxu0
        %v1386 = vadd.f32 %v1197, %v1385
        %v1387 = vpop.f32.mrf.mxu0
        %1388 = vdwg.mxu0
        %1389 = vmatprep.subr.mxu0 0.0
        %1390 = vmatpush1.msra.mxu0 %v1191
        %1391 = vmatprep.subr.mxu0 0.0
        %1392 = vmatpush1.msra.mxu0 %v1190
        %1393 = vmatprep.subr.mxu0 0.0
        %1394 = vmatpush1.msra.mxu0 %v1189
        %1395 = vmatprep.subr.mxu0 0.0
        %1396 = vmatpush1.msra.mxu0 %v1188
        %1397 = vmatprep.subr.mxu0 0.0
        %1398 = vmatpush1.msra.mxu0 %v1187
        %1399 = vmatprep.subr.mxu0 0.0
        %1400 = vmatpush1.msra.mxu0 %v1186
        %1401 = vmatprep.subr.mxu0 0.0
        %1402 = vmatpush1.msra.mxu0 %v1185
        %1403 = vmatprep.subr.mxu0 0.0
        %1404 = vmatpush1.msra.mxu0 %v1184
        %1405 = vmatprep.subr.mxu0 0.0
        %1406 = vmatpush1.msra.mxu0 %v1183
        %1407 = vmatprep.subr.mxu0 0.0
        %1408 = vmatpush1.msra.mxu0 %v1182
        %1409 = vmatprep.subr.mxu0 0.0
        %1410 = vmatpush1.msra.mxu0 %v1181
        %1411 = vmatprep.subr.mxu0 0.0
        %1412 = vmatpush1.msra.mxu0 %v1180
        %1413 = vmatprep.subr.mxu0 0.0
        %1414 = vmatpush1.msra.mxu0 %v1179
        %1415 = vmatprep.subr.mxu0 0.0
        %1416 = vmatpush1.msra.mxu0 %v1178
        %1417 = vmatprep.subr.mxu0 0.0
        %1418 = vmatpush1.msra.mxu0 %v1177
        %1419 = vmatprep.subr.mxu0 0.0
        %1420 = vmatpush1.msra.mxu0 %v1176
        %1421 = vmatprep.subr.mxu0 0.0
        %1422 = vmatpush2.msra.mxu0 0.0
        %1423 = vmatprep.subr.mxu0 0.0
        %1424 = vmatpush2.msra.mxu0 0.0
        %1425 = vmatprep.subr.mxu0 0.0
        %1426 = vmatpush2.msra.mxu0 0.0
        %1427 = vmatprep.subr.mxu0 0.0
        %1428 = vmatpush2.msra.mxu0 0.0
        %1429 = vmatprep.subr.mxu0 0.0
        %1430 = vmatpush2.msra.mxu0 0.0
        %1431 = vmatprep.subr.mxu0 0.0
        %1432 = vmatpush2.msra.mxu0 0.0
        %1433 = vmatprep.subr.mxu0 0.0
        %1434 = vmatpush2.msra.mxu0 0.0
        %1435 = vmatprep.subr.mxu0 0.0
        %1436 = vmatpush2.msra.mxu0 0.0
        %1437 = vmatprep.subr.mxu0 0.0
        %1438 = vmatpush2.msra.mxu0 0.0
        %1439 = vmatprep.subr.mxu0 0.0
        %1440 = vmatpush2.msra.mxu0 0.0
        %1441 = vmatprep.subr.mxu0 0.0
        %1442 = vmatpush2.msra.mxu0 0.0
        %1443 = vmatprep.subr.mxu0 0.0
        %1444 = vmatpush2.msra.mxu0 0.0
        %1445 = vmatprep.subr.mxu0 0.0
        %1446 = vmatpush2.msra.mxu0 0.0
        %1447 = vmatprep.subr.mxu0 0.0
        %1448 = vmatpush2.msra.mxu0 0.0
        %1449 = vmatprep.subr.mxu0 0.0
        %1450 = vmatpush2.msra.mxu0 0.0
        %1451 = vmatprep.subr.mxu0 0.0
        %1452 = vmatpush2.msra.mxu0 0.0
        %1453 = vmatprep.mubr.f32.mxu0 0.0
        %1454 = vmatmul.mubr.f32.gmra.mxu0 %v1071
        %v1455 = vpop.f32.mrf.mxu0
        %v1456 = vadd.f32 %v1266, %v1455
        %v1457 = vpop.f32.mrf.mxu0
        %1458 = vmatprep.mubr.f32.mxu0 0.0
        %1459 = vmatmul.mubr.f32.gmra.mxu0 %v1074
        %v1460 = vpop.f32.mrf.mxu0
        %v1461 = vadd.f32 %v1271, %v1460
        %v1462 = vpop.f32.mrf.mxu0
        %1463 = vmatprep.mubr.f32.mxu0 0.0
        %1464 = vmatmul.mubr.f32.gmra.mxu0 %v1077
        %v1465 = vpop.f32.mrf.mxu0
        %v1466 = vadd.f32 %v1276, %v1465
        %v1467 = vpop.f32.mrf.mxu0
        %1468 = vmatprep.mubr.f32.mxu0 0.0
        %1469 = vmatmul.mubr.f32.gmra.mxu0 %v1080
        %v1470 = vpop.f32.mrf.mxu0
        %v1471 = vadd.f32 %v1281, %v1470
        %v1472 = vpop.f32.mrf.mxu0
        %1473 = vmatprep.mubr.f32.mxu0 0.0
        %1474 = vmatmul.mubr.f32.gmra.mxu0 %v1083
        %v1475 = vpop.f32.mrf.mxu0
        %v1476 = vadd.f32 %v1286, %v1475
        %v1477 = vpop.f32.mrf.mxu0
        %1478 = vmatprep.mubr.f32.mxu0 0.0
        %1479 = vmatmul.mubr.f32.gmra.mxu0 %v1086
        %v1480 = vpop.f32.mrf.mxu0
        %v1481 = vadd.f32 %v1291, %v1480
        %v1482 = vpop.f32.mrf.mxu0
        %1483 = vmatprep.mubr.f32.mxu0 0.0
        %1484 = vmatmul.mubr.f32.gmra.mxu0 %v1089
        %v1485 = vpop.f32.mrf.mxu0
        %v1486 = vadd.f32 %v1296, %v1485
        %v1487 = vpop.f32.mrf.mxu0
        %1488 = vmatprep.mubr.f32.mxu0 0.0
        %1489 = vmatmul.mubr.f32.gmra.mxu0 %v1092
        %v1490 = vpop.f32.mrf.mxu0
        %v1491 = vadd.f32 %v1301, %v1490
        %v1492 = vpop.f32.mrf.mxu0
        %1493 = vmatprep.mubr.f32.mxu0 0.0
        %1494 = vmatmul.mubr.f32.gmra.mxu0 %v1095
        %v1495 = vpop.f32.mrf.mxu0
        %v1496 = vadd.f32 %v1306, %v1495
        %v1497 = vpop.f32.mrf.mxu0
        %1498 = vmatprep.mubr.f32.mxu0 0.0
        %1499 = vmatmul.mubr.f32.gmra.mxu0 %v1098
        %v1500 = vpop.f32.mrf.mxu0
        %v1501 = vadd.f32 %v1311, %v1500
        %v1502 = vpop.f32.mrf.mxu0
        %1503 = vmatprep.mubr.f32.mxu0 0.0
        %1504 = vmatmul.mubr.f32.gmra.mxu0 %v1101
        %v1505 = vpop.f32.mrf.mxu0
        %v1506 = vadd.f32 %v1316, %v1505
        %v1507 = vpop.f32.mrf.mxu0
        %1508 = vmatprep.mubr.f32.mxu0 0.0
        %1509 = vmatmul.mubr.f32.gmra.mxu0 %v1104
        %v1510 = vpop.f32.mrf.mxu0
        %v1511 = vadd.f32 %v1321, %v1510
        %v1512 = vpop.f32.mrf.mxu0
        %1513 = vmatprep.mubr.f32.mxu0 0.0
        %1514 = vmatmul.mubr.f32.gmra.mxu0 %v1107
        %v1515 = vpop.f32.mrf.mxu0
        %v1516 = vadd.f32 %v1326, %v1515
        %v1517 = vpop.f32.mrf.mxu0
        %1518 = vmatprep.mubr.f32.mxu0 0.0
        %1519 = vmatmul.mubr.f32.gmra.mxu0 %v1110
        %v1520 = vpop.f32.mrf.mxu0
        %v1521 = vadd.f32 %v1331, %v1520
        %v1522 = vpop.f32.mrf.mxu0
        %1523 = vmatprep.mubr.f32.mxu0 0.0
        %1524 = vmatmul.mubr.f32.gmra.mxu0 %v1113
        %v1525 = vpop.f32.mrf.mxu0
        %v1526 = vadd.f32 %v1336, %v1525
        %v1527 = vpop.f32.mrf.mxu0
        %1528 = vmatprep.mubr.f32.mxu0 0.0
        %1529 = vmatmul.mubr.f32.gmra.mxu0 %v1116
        %v1530 = vpop.f32.mrf.mxu0
        %v1531 = vadd.f32 %v1341, %v1530
        %v1532 = vpop.f32.mrf.mxu0
        %1533 = vmatprep.mubr.f32.mxu0 0.0
        %1534 = vmatmul.mubr.f32.gmra.mxu0 %v1119
        %v1535 = vpop.f32.mrf.mxu0
        %v1536 = vadd.f32 %v1346, %v1535
        %v1537 = vpop.f32.mrf.mxu0
        %1538 = vmatprep.mubr.f32.mxu0 0.0
        %1539 = vmatmul.mubr.f32.gmra.mxu0 %v1122
        %v1540 = vpop.f32.mrf.mxu0
        %v1541 = vadd.f32 %v1351, %v1540
        %v1542 = vpop.f32.mrf.mxu0
        %1543 = vmatprep.mubr.f32.mxu0 0.0
        %1544 = vmatmul.mubr.f32.gmra.mxu0 %v1125
        %v1545 = vpop.f32.mrf.mxu0
        %v1546 = vadd.f32 %v1356, %v1545
        %v1547 = vpop.f32.mrf.mxu0
        %1548 = vmatprep.mubr.f32.mxu0 0.0
        %1549 = vmatmul.mubr.f32.gmra.mxu0 %v1128
        %v1550 = vpop.f32.mrf.mxu0
        %v1551 = vadd.f32 %v1361, %v1550
        %v1552 = vpop.f32.mrf.mxu0
        %1553 = vmatprep.mubr.f32.mxu0 0.0
        %1554 = vmatmul.mubr.f32.gmra.mxu0 %v1131
        %v1555 = vpop.f32.mrf.mxu0
        %v1556 = vadd.f32 %v1366, %v1555
        %v1557 = vpop.f32.mrf.mxu0
        %1558 = vmatprep.mubr.f32.mxu0 0.0
        %1559 = vmatmul.mubr.f32.gmra.mxu0 %v1134
        %v1560 = vpop.f32.mrf.mxu0
        %v1561 = vadd.f32 %v1371, %v1560
        %v1562 = vpop.f32.mrf.mxu0
        %1563 = vmatprep.mubr.f32.mxu0 0.0
        %1564 = vmatmul.mubr.f32.gmra.mxu0 %v1137
        %v1565 = vpop.f32.mrf.mxu0
        %v1566 = vadd.f32 %v1376, %v1565
        %v1567 = vpop.f32.mrf.mxu0
        %1568 = vmatprep.mubr.f32.mxu0 0.0
        %1569 = vmatmul.mubr.f32.gmra.mxu0 %v1140
        %v1570 = vpop.f32.mrf.mxu0
        %v1571 = vadd.f32 %v1381, %v1570
        %v1572 = vpop.f32.mrf.mxu0
        %1573 = vmatprep.mubr.f32.mxu0 0.0
        %1574 = vmatmul.mubr.f32.gmra.mxu0 %v1143
        %v1575 = vpop.f32.mrf.mxu0
        %v1576 = vadd.f32 %v1386, %v1575
        %v1577 = vpop.f32.mrf.mxu0
        %1578 = vdwg.mxu0
        %1579 = vst [vmem:[%s271] sm:$0xff] %v1456
        %1580 = vst [vmem:[%s271 + $0x8] sm:$0xff] %v1461
        %1581 = vst [vmem:[%s271 + $0x10] sm:$0xff] %v1466
        %1582 = vst [vmem:[%s271 + $0x18] sm:$0xff] %v1471
        %1583 = vst [vmem:[%s271 + $0x20] sm:$0xff] %v1476
        %1584 = vst [vmem:[%s271 + $0x28] sm:$0xff] %v1481
        %1585 = vst [vmem:[%s271 + $0x30] sm:$0xff] %v1486
        %1586 = vst [vmem:[%s271 + $0x38] sm:$0xff] %v1491
        %1587 = vst [vmem:[%s271 + $0x40] sm:$0xff] %v1496
        %1588 = vst [vmem:[%s271 + $0x48] sm:$0xff] %v1501
        %1589 = vst [vmem:[%s271 + $0x50] sm:$0xff] %v1506
        %1590 = vst [vmem:[%s271 + $0x58] sm:$0xff] %v1511
        %1591 = vst [vmem:[%s271 + $0x60] sm:$0xff] %v1516
        %1592 = vst [vmem:[%s271 + $0x68] sm:$0xff] %v1521
        %1593 = vst [vmem:[%s271 + $0x70] sm:$0xff] %v1526
        %1594 = vst [vmem:[%s271 + $0x78] sm:$0xff] %v1531
        %1595 = vst [vmem:[%s271 + $0x80] sm:$0xff] %v1536
        %1596 = vst [vmem:[%s271 + $0x88] sm:$0xff] %v1541
        %1597 = vst [vmem:[%s271 + $0x90] sm:$0xff] %v1546
        %1598 = vst [vmem:[%s271 + $0x98] sm:$0xff] %v1551
        %1599 = vst [vmem:[%s271 + $0xa0] sm:$0xff] %v1556
        %1600 = vst [vmem:[%s271 + $0xa8] sm:$0xff] %v1561
        %1601 = vst [vmem:[%s271 + $0xb0] sm:$0xff] %v1566
        %1602 = vst [vmem:[%s271 + $0xb8] sm:$0xff] %v1571
        %1603 = vst [vmem:[%s271 + $0xc0] sm:$0xff] %v1576
        %s1604 = sand.u32 %s141, 1
        %s1605 = scalar_lea.sflag [#allocation4], %s1604
        %s1606 = sand.u32 %s141, 1
        %s1607 = smul.addr %s1606, 200
        %s1608 = scalar_lea.vmem [#allocation8], %s1607
        // Predicated region
        $region53: #{tpu_custom_call.1} parent=39 // pred_check
          %p1609 = pneg %p151
        $region54: #{tpu_custom_call.1} parent=39 // pred_check_branch
          %1611 = sbr.rel (%p1609) target = $region56
        $region55: #{tpu_custom_call.1} parent=39 // pred_region
          %s1612 = smul.u32 25, %s23
          %s1614 = ssub.s32 3200, 3200
          %1615 = vsyncadd %s1605, %s1614
          %s1616 = smul.addr %s1612, 128
          %s1617 = scalar_lea.hbm %s5, %s1616
          %s1618 = sshll.u32 %s1608, 4
          %s1619 = int_to_ptr.vmem [resolvable:$true] %s1618
          %1624 = dma.vmem_to_hbm [thread:$0]  %s1619, 3200, %s1617, %s1605, 128, 128, 8
        $region56: #{tpu_custom_call.1} parent=39 // pred_fallthru
          _
      $region40: #{tpu_custom_call.1} parent=5 // pred_fallthru
        _
      %p1625 = scmp.le.s32.totalorder 2, %s18
      // Predicated region
      $region57: #{tpu_custom_call.1} parent=5 // pred_check
        %p1626 = pneg %p1625
      $region58: #{tpu_custom_call.1} parent=5 // pred_check_branch
        %1628 = sbr.rel (%p1626) target = $region60
      $region59: #{tpu_custom_call.1} parent=5 // pred_region
        %s1629 = ssub.s32 %s18, 2
        // Predicated region
        $region61: #{tpu_custom_call.1} parent=59 // pred_check
          %p1630 = pneg %p157
        $region62: #{tpu_custom_call.1} parent=59 // pred_check_branch
          %1632 = sbr.rel (%p1630) target = $region64
        $region63: #{tpu_custom_call.1} parent=59 // pred_region
          %s1633 = sand.u32 %s142, 1
          %s1634 = scalar_lea.sflag [#allocation4], %s1633
          %s1635 = sand.u32 %s142, 1
          %s1636 = smul.addr %s1635, 200
          %s1637 = scalar_lea.vmem [#allocation8], %s1636
          %1638 = dma.done %s1634, 3200
        $region64: #{tpu_custom_call.1} parent=59 // pred_fallthru
          _
      $region60: #{tpu_custom_call.1} parent=5 // pred_fallthru
        _
    $region6: #{tpu_custom_call.1} parent=1 // loop_footer
      %s22 = sadd.s32 1, %s18
    $region7: #{tpu_custom_call.1} parent=1 // loop_footer_branch
      %17 = sbr.rel target = $region3
    $region8: #{tpu_custom_call.1} parent=1 // loop_exit
      _
    %1639 = vsyncpa [#allocation3], 1
    %s1640 = scalar_lea.sflag [#allocation3], 1
    %1641 = vsyncpa %s1640, 1
    %1642 = vsyncpa [#allocation6], 1
    %1643 = vsyncpa [#allocation4], 1
    %s1644 = scalar_lea.sflag [#allocation4], 1
    %1645 = vsyncpa %s1644, 1

</llo_original>
